<compile_context>
chip_gen: v6e
topology: v6e:2x2x1
jax: 0.10.0
libtpu: 0.0.40
codegen_flags: <defaults>
</compile_context>

<pallas_src>
import numpy as np
import jax
import jax.numpy as jnp
from jax.experimental import pallas as pl
from jax.experimental.pallas import tpu as pltpu


def attention_kernel(x_ref, qb_ref, w1_ref, w2_ref, b2_ref, o_ref):
    # x_ref : (B_BLK, C, P)   image block, channel-major (free NCHW reshape, no wrapper transpose)
    # qb_ref: (B_BLK, K)      precomputed question FC + conv_1 bias (q@wq+bq+b1), f32
    # w1_ref: (C, K)          conv_1 weight (1x1 conv == matmul), f32 or bf16
    # w2_ref: (K, G)          conv_2 weight (1x1 conv == matmul), f32 or bf16
    # b2_ref: (1, G)          conv_2 bias, f32
    # o_ref : (B_BLK, G*P)    per-batch softmax, glimpse-major flat order (NCHW), f32
    B_BLK, C, P = x_ref.shape
    K = w1_ref.shape[1]
    G = w2_ref.shape[1]

    # In-VMEM C<->P relayout (XLU transpose) replaces the old wrapper-side
    # NCHW->NHWC transpose that cost a full extra HBM pass over the image.
    # Transpose on the f32 path (well supported), then cast to the MXU dtype.
    x_f32 = x_ref[...].astype(jnp.float32)                          # (B_BLK, C, P)
    x2d = jnp.transpose(x_f32, (0, 2, 1)).reshape(B_BLK * P, C)     # (B_BLK*P, C)
    x2d = x2d.astype(w1_ref.dtype)

    # One big MXU matmul: M = B_BLK*P rows (512 for B_BLK=8, P=64), f32 accum.
    img = jnp.dot(x2d, w1_ref[...],
                  preferred_element_type=jnp.float32)               # (B_BLK*P, K)

    # Add per-batch question bias (broadcast over spatial) + ReLU, in f32.
    h = jnp.maximum(img.reshape(B_BLK, P, K) + qb_ref[...][:, None, :],
                    0.0)                                            # (B_BLK, P, K)
    h = h.reshape(B_BLK * P, K).astype(w2_ref.dtype)

    logits = jnp.dot(h, w2_ref[...],
                     preferred_element_type=jnp.float32) + b2_ref[...]  # (B_BLK*P, G)

    # Flatten to glimpse-major (NCHW) lane-dense rows, then per-batch softmax
    # over the full glimpse*s1*s2 set (segmented per batch element).
    flat = jnp.transpose(logits.reshape(B_BLK, P, G),
                         (0, 2, 1)).reshape(B_BLK, G * P)           # (B_BLK, G*P)
    m = jnp.max(flat, axis=-1, keepdims=True)
    e = jnp.exp(flat - m)
    s = jnp.sum(e, axis=-1, keepdims=True)
    # EUP reciprocal (separate issue slot) instead of iterative VALU divide.
    o_ref[...] = e * pl.reciprocal(s)


def _pick_batch_block(b, P, C, *, itemsize=4, vmem_budget_bytes=8 << 20):
    """Pick the per-step batch block.

    Prefers multiples of 8 (clean (8,128) sublane-aligned qb/out tiles), the
    largest block whose double-buffered image tile fits a conservative VMEM
    budget (v7x has only 64 MiB/TC), and >= 2 grid steps where possible so
    both v7x TensorCores get work.  Falls back below 8 only when b itself has
    no multiple-of-8 divisor.
    """
    def fits(blk):
        return 2 * blk * P * C * itemsize <= vmem_budget_bytes  # double-buffered x

    divisors = [d for d in range(1, b + 1) if b % d == 0]
    mult8 = [d for d in divisors if d % 8 == 0 and fits(d)]
    if mult8:
        two_step = [d for d in mult8 if b // d >= 2]
        return max(two_step) if two_step else max(mult8)
    small = [d for d in divisors if fits(d)]
    two_step = [d for d in small if b // d >= 2]
    return max(two_step) if two_step else max(small)


def attention_forward(image_embed, questions_embed, params, *,
                      batch_block=None, use_bf16=False):
    """image_embed: (b, C, s1, s2) NCHW; questions_embed: (b, 1, Q)."""
    w1, b1, wq, bq, w2, b2 = params
    b, C, s1, s2 = image_embed.shape
    P = s1 * s2
    K = w1.shape[1]
    G = w2.shape[1]

    if batch_block is None:
        B_BLK = _pick_batch_block(b, P, C, itemsize=image_embed.dtype.itemsize)
    else:
        B_BLK = batch_block
    assert b % B_BLK == 0, (b, B_BLK)

    # Free reshape: NCHW (b, C, s1, s2) -> (b, C, P).  No transpose, no extra
    # HBM traffic; the C<->P relayout happens in VMEM inside the kernel.
    x = image_embed.reshape(b, C, P)

    # Hoist the question FC (M=1 matmul) out of the kernel: one batched XLA
    # GEMM, with conv_1's bias folded in as well.  Kept f32 (added post-MXU).
    qb = (questions_embed.reshape(b, -1).astype(jnp.float32) @ w1.dtype.type(1) * 0
          ) if False else (questions_embed.reshape(b, -1) @ wq + bq + b1)   # (b, K)
    qb = qb.astype(jnp.float32)

    # Optional bf16 MXU path: weights cast here (tiny), x/h cast in-kernel so
    # no extra HBM round trip is introduced for the image.
    w1m = w1.astype(jnp.bfloat16) if use_bf16 else w1
    w2m = w2.astype(jnp.bfloat16) if use_bf16 else w2

    # VMEM use per step: x block (double-buffered) + ~(C*K + K*G)*dtype of
    # weights + small qb/out tiles -- well under the 32 MiB default scoped
    # limit, so vmem_limit_bytes is left at its default.
    out = pl.pallas_call(
        attention_kernel,
        out_shape=jax.ShapeDtypeStruct((b, G * P), jnp.float32),
        grid_spec=pltpu.PrefetchScalarGridSpec(
            num_scalar_prefetch=0,
            grid=(b // B_BLK,),
            in_specs=[
                pl.BlockSpec((B_BLK, C, P), lambda i: (i, 0, 0)),   # image block (channel-major)
                pl.BlockSpec((B_BLK, K),    lambda i: (i, 0)),      # fused question bias
                pl.BlockSpec((C, K),        lambda i: (0, 0)),      # conv_1 weight
                pl.BlockSpec((K, G),        lambda i: (0, 0)),      # conv_2 weight
                pl.BlockSpec((1, G),        lambda i: (0, 0)),      # conv_2 bias
            ],
            out_specs=pl.BlockSpec((B_BLK, G * P), lambda i: (i, 0)),
        ),
        compiler_params=pltpu.CompilerParams(
            dimension_semantics=("parallel",)),
    )(x, qb, w1m, w2m, b2)

    return out.reshape(b, G, s1, s2)


def attention_reference(image_embed, questions_embed, params):
    """Pure-JAX reference reproducing the PyTorch forward."""
    w1, b1, wq, bq, w2, b2 = params
    b, C, s1, s2 = image_embed.shape
    G = w2.shape[1]
    x = jnp.transpose(image_embed, (0, 2, 3, 1)).reshape(b, -1, C)   # (b, P, C)
    img_conv = x @ w1 + b1                                           # (b, P, K)
    qns = questions_embed.reshape(b, -1) @ wq + bq                   # (b, K)
    h = jax.nn.relu(img_conv + qns[:, None, :])
    logits = h @ w2 + b2                                             # (b, P, G)
    logits_nchw = jnp.transpose(logits, (0, 2, 1))                   # (b, G, P)
    probs = jax.nn.softmax(logits_nchw.reshape(b, -1), axis=1)
    return probs.reshape(b, G, s1, s2)


if __name__ == "__main__":
    # Small, TPU-friendly shapes consistent with the module's forward:
    #   image_embed (b, image_ftrs, s1, s2), questions_embed (b, 1, question_ftrs)
    # b=16 so the sublane-aligned B_BLK=8 still leaves a 2-long parallel grid
    # for v7x's two TensorCores (fused matmul M = 8*64 = 512).
    b, image_ftrs, question_ftrs, k, glimpse, s1, s2 = 16, 256, 128, 128, 2, 8, 8

    key = jax.random.PRNGKey(0)
    k0, k1, k2, k3, k4, k5, k6, k7 = jax.random.split(key, 8)

    image_embed = jax.random.normal(k0, (b, image_ftrs, s1, s2), jnp.float32)
    questions_embed = jax.random.normal(k1, (b, 1, question_ftrs), jnp.float32)

    # Deterministic synthetic parameters (conv weights stored as (Cin, Cout) matrices).
    scale = 0.05
    w1 = jax.random.normal(k2, (image_ftrs, k), jnp.float32) * scale      # conv_1
    b1 = jax.random.normal(k3, (1, k), jnp.float32) * scale
    wq = jax.random.normal(k4, (question_ftrs, k), jnp.float32) * scale   # question_mid_fc
    bq = jax.random.normal(k5, (1, k), jnp.float32) * scale
    w2 = jax.random.normal(k6, (k, glimpse), jnp.float32) * scale         # conv_2
    b2 = jax.random.normal(k7, (1, glimpse), jnp.float32) * scale
    params = (w1, b1, wq, bq, w2, b2)

    ref = attention_reference(image_embed, questions_embed, params)
    ref = jax.block_until_ready(ref)

    # f32 path: strict check against the reference.
    out = attention_forward(image_embed, questions_embed, params)
    out = jax.block_until_ready(out)
    assert out.shape == (b, glimpse, s1, s2), out.shape
    np.testing.assert_allclose(np.asarray(out), np.asarray(ref), rtol=1e-5, atol=1e-6)
    # softmax over the full (glimpse*s1*s2) flattening -> each batch sums to 1
    np.testing.assert_allclose(np.asarray(out).reshape(b, -1).sum(axis=1),
                               np.ones(b), rtol=1e-5, atol=1e-5)

    # bf16 MXU path (native-bf16 MXU, halved image DMA): relaxed tolerance.
    out_bf16 = attention_forward(image_embed.astype(jnp.bfloat16),
                                 questions_embed, params, use_bf16=True)
    out_bf16 = jax.block_until_ready(out_bf16)
    assert out_bf16.shape == (b, glimpse, s1, s2), out_bf16.shape
    np.testing.assert_allclose(np.asarray(out_bf16), np.asarray(ref),
                               rtol=5e-2, atol=5e-4)
    np.testing.assert_allclose(np.asarray(out_bf16).reshape(b, -1).sum(axis=1),
                               np.ones(b), rtol=1e-4, atol=1e-4)

    print("KERNEL_OK")
</pallas_src>

<mosaic_0001>
module attributes {stable_mosaic.version = 11 : i64} {
  func.func @attention_kernel(%arg0: i32, %arg1: memref<8x256x64xf32, #tpu.memory_space<vmem>>, %arg2: memref<8x128xf32, #tpu.memory_space<vmem>>, %arg3: memref<256x128xf32, #tpu.memory_space<vmem>>, %arg4: memref<128x2xf32, #tpu.memory_space<vmem>>, %arg5: memref<1x2xf32, #tpu.memory_space<vmem>>, %arg6: memref<8x128xf32, #tpu.memory_space<vmem>>) attributes {dimension_semantics = [#tpu.dimension_semantics<parallel>], iteration_bounds = array<i64: 2>, scalar_prefetch = 0 : i64, scratch_operands = 0 : i64, tpu.core_type = #tpu.core_type<tc>, window_params = [{transform_indices = @transform_0, window_bounds = array<i64: 8, 256, 64>}, {transform_indices = @transform_1, window_bounds = array<i64: 8, 128>}, {pipeline_mode = #tpu.pipeline_mode<synchronous>, transform_indices = @transform_2, window_bounds = array<i64: 256, 128>}, {pipeline_mode = #tpu.pipeline_mode<synchronous>, transform_indices = @transform_3, window_bounds = array<i64: 128, 2>}, {pipeline_mode = #tpu.pipeline_mode<synchronous>, transform_indices = @transform_4, window_bounds = array<i64: 1, 2>}, {transform_indices = @transform_5, window_bounds = array<i64: 8, 128>}]} {
    %c0 = arith.constant 0 : index
    %c0_0 = arith.constant 0 : index
    %c0_1 = arith.constant 0 : index
    %0 = vector.load %arg1[%c0, %c0_0, %c0_1] : memref<8x256x64xf32, #tpu.memory_space<vmem>>, vector<8x256x64xf32>
    %1 = tpu.transpose %0, [0, 2, 1] : vector<8x256x64xf32> -> vector<8x64x256xf32>
    %2 = vector.shape_cast %1 : vector<8x64x256xf32> to vector<512x256xf32>
    %c0_2 = arith.constant 0 : index
    %c0_3 = arith.constant 0 : index
    %3 = vector.load %arg3[%c0_2, %c0_3] : memref<256x128xf32, #tpu.memory_space<vmem>>, vector<256x128xf32>
    %cst = arith.constant dense<0.000000e+00> : vector<512x128xf32>
    %4 = tpu.matmul %2, %3, %cst {dimension_numbers = #tpu.dot_dimension_numbers<[1], [0], [0], [1], [0, 0, 1, 1], [], []>} : vector<512x256xf32>, vector<256x128xf32>, vector<512x128xf32> -> vector<512x128xf32>
    %5 = vector.shape_cast %4 : vector<512x128xf32> to vector<8x64x128xf32>
    %c0_4 = arith.constant 0 : index
    %c0_5 = arith.constant 0 : index
    %6 = vector.load %arg2[%c0_4, %c0_5] : memref<8x128xf32, #tpu.memory_space<vmem>>, vector<8x128xf32>
    %7 = vector.shape_cast %6 : vector<8x128xf32> to vector<8x1x128xf32>
    %8 = vector.broadcast %7 : vector<8x1x128xf32> to vector<8x64x128xf32>
    %9 = arith.addf %5, %8 : vector<8x64x128xf32>
    %cst_6 = arith.constant 0.000000e+00 : f32
    %10 = vector.broadcast %cst_6 : f32 to vector<8x64x128xf32>
    %11 = arith.maximumf %9, %10 : vector<8x64x128xf32>
    %12 = vector.shape_cast %11 : vector<8x64x128xf32> to vector<512x128xf32>
    %c0_7 = arith.constant 0 : index
    %c0_8 = arith.constant 0 : index
    %13 = vector.load %arg4[%c0_7, %c0_8] : memref<128x2xf32, #tpu.memory_space<vmem>>, vector<128x2xf32>
    %cst_9 = arith.constant dense<0.000000e+00> : vector<512x2xf32>
    %14 = tpu.matmul %12, %13, %cst_9 {dimension_numbers = #tpu.dot_dimension_numbers<[1], [0], [0], [1], [0, 0, 1, 1], [], []>} : vector<512x128xf32>, vector<128x2xf32>, vector<512x2xf32> -> vector<512x2xf32>
    %c0_10 = arith.constant 0 : index
    %c0_11 = arith.constant 0 : index
    %15 = vector.load %arg5[%c0_10, %c0_11] : memref<1x2xf32, #tpu.memory_space<vmem>>, vector<1x2xf32>
    %16 = vector.broadcast %15 : vector<1x2xf32> to vector<512x2xf32>
    %17 = arith.addf %14, %16 : vector<512x2xf32>
    %18 = vector.shape_cast %17 : vector<512x2xf32> to vector<8x64x2xf32>
    %19 = tpu.transpose %18, [0, 2, 1] : vector<8x64x2xf32> -> vector<8x2x64xf32>
    %20 = vector.shape_cast %19 : vector<8x2x64xf32> to vector<8x128xf32>
    %cst_12 = arith.constant dense<0xFF800000> : vector<8xf32>
    %21 = vector.multi_reduction <maximumf>, %20, %cst_12 [1] : vector<8x128xf32> to vector<8xf32>
    %22 = vector.shape_cast %21 : vector<8xf32> to vector<8x1xf32>
    %23 = vector.broadcast %22 : vector<8x1xf32> to vector<8x128xf32>
    %24 = arith.subf %20, %23 : vector<8x128xf32>
    %25 = math.exp %24 : vector<8x128xf32>
    %cst_13 = arith.constant dense<0.000000e+00> : vector<8xf32>
    %26 = vector.multi_reduction <add>, %25, %cst_13 [1] : vector<8x128xf32> to vector<8xf32>
    %27 = vector.shape_cast %26 : vector<8xf32> to vector<8x1xf32>
    %28 = tpu.reciprocal %27 : vector<8x1xf32> -> vector<8x1xf32>
    %29 = vector.broadcast %28 : vector<8x1xf32> to vector<8x128xf32>
    %30 = arith.mulf %25, %29 : vector<8x128xf32>
    %c0_14 = arith.constant 0 : index
    %c0_15 = arith.constant 0 : index
    %31 = vector.load %arg6[%c0_14, %c0_15] : memref<8x128xf32, #tpu.memory_space<vmem>>, vector<8x128xf32>
    tpu.vector_store %arg6[%c0_14, %c0_15], %30 {strides = array<i32>} : memref<8x128xf32, #tpu.memory_space<vmem>>, vector<8x128xf32>,
    return
  }
  func.func @transform_0(%arg0: i32) -> (i32, i32, i32) {
    %c0_i32 = arith.constant 0 : i32
    %c0_i32_0 = arith.constant 0 : i32
    %c0_i32_1 = arith.constant 0 : i32
    return %arg0, %c0_i32, %c0_i32_0 : i32, i32, i32
  }
  func.func @transform_1(%arg0: i32) -> (i32, i32) {
    %c0_i32 = arith.constant 0 : i32
    %c0_i32_0 = arith.constant 0 : i32
    return %arg0, %c0_i32 : i32, i32
  }
  func.func @transform_2(%arg0: i32) -> (i32, i32) {
    %c0_i32 = arith.constant 0 : i32
    %c0_i32_0 = arith.constant 0 : i32
    %c0_i32_1 = arith.constant 0 : i32
    return %c0_i32, %c0_i32_0 : i32, i32
  }
  func.func @transform_3(%arg0: i32) -> (i32, i32) {
    %c0_i32 = arith.constant 0 : i32
    %c0_i32_0 = arith.constant 0 : i32
    %c0_i32_1 = arith.constant 0 : i32
    return %c0_i32, %c0_i32_0 : i32, i32
  }
  func.func @transform_4(%arg0: i32) -> (i32, i32) {
    %c0_i32 = arith.constant 0 : i32
    %c0_i32_0 = arith.constant 0 : i32
    %c0_i32_1 = arith.constant 0 : i32
    return %c0_i32, %c0_i32_0 : i32, i32
  }
  func.func @transform_5(%arg0: i32) -> (i32, i32) {
    %c0_i32 = arith.constant 0 : i32
    %c0_i32_0 = arith.constant 0 : i32
    return %arg0, %c0_i32 : i32, i32
  }
}

</mosaic_0001>

<llo_original>
// kernel: tpu_custom_call.1
$region0: #{tpu_custom_call.1}
  #allocation0 [shape = 'u32[]', space=smem, size = 0x4, offset = 0x4, fixed_abs, tag = 'smem constant byte address 0x4 - core index']
  #allocation1 [shape = 'u32[144,128]{1,0:T(1,128)}', space=vmem, size = 0x12000, scoped, tag = 'internal scratch']
  %s0 = inlined_call_operand.vmem [shape: f32[16,256,64], index: 0, kind: input, shape index: {}]
  %s1 = inlined_call_operand.vmem [shape: f32[16,128], index: 1, kind: input, shape index: {}]
  %s2 = inlined_call_operand.vmem [shape: f32[256,128], index: 2, kind: input, shape index: {}]
  %s3 = inlined_call_operand.vmem [shape: f32[128,2], index: 3, kind: input, shape index: {}]
  %s4 = inlined_call_operand.vmem [shape: f32[1,2], index: 4, kind: input, shape index: {}]
  %s5 = inlined_call_operand.hbm [shape: f32[16,128], index: 5, kind: output, shape index: {}]
  %s6 = sld [smem:[#allocation0]]
  $region53: #{tpu_custom_call.1} parent=0
    _
  %s8 = ssub.s32 1, %s6
  %s9 = scalar_select 0, %s8, %s6
  $region1: #{tpu_custom_call.1} parent=0
    #allocation2 [shape = 'u8[8192]{0}', space=vmem, size = 0x2000, scoped, tag = 'output window, operand 0']
    #allocation3 [shape = 's32[2]{0}', space=sflag, size = 0x8, scoped, tag = 'scoped memory for tpu_custom_call.1']
    %10 = vsyncpa [#allocation3], 0
    %s11 = scalar_lea.sflag [#allocation3], 1
    %12 = vsyncpa %s11, 0
    loop: start=0, step=1, limit=4
    $region2: #{tpu_custom_call.1} parent=1 // loop_pre_header
      _
    $region3: #{tpu_custom_call.1} parent=1 // loop_header
      %s14 = sphi 0, %s18
      %p15 = scmp.ge.s32.totalorder %s14, 4
      %s24 = sphi 0, %s26
      %s27 = sphi 0, %s24
      %s28 = sphi 0, %s27
      %s44 = sphi 0, %s28
      %s50 = sphi 0, %s52
      %s53 = sphi 0, %s50
      %s54 = sphi 0, %s53
      %s70 = sphi 0, %s54
      %s74 = sphi 0, %s74
      %s76 = sphi 0, %s74
      %s77 = sphi 0, %s76
      %s91 = sphi 0, %s77
      %s95 = sphi 0, %s95
      %s97 = sphi 0, %s95
      %s98 = sphi 0, %s97
      %s112 = sphi 0, %s98
      %s116 = sphi 0, %s116
      %s118 = sphi 0, %s116
      %s119 = sphi 0, %s118
      %s133 = sphi 0, %s119
      %s139 = sphi 0, %s141
      %s142 = sphi 0, %s139
      %s143 = sphi 0, %s142
      %s159 = sphi 0, %s143
    $region4: #{tpu_custom_call.1} parent=1 // loop_header_branch
      %17 = sbr.rel (%p15) target = $region8
    $region5: #{tpu_custom_call.1} parent=1 // loop_body
      %s19 = ssub.s32 %s14, 1
      %s20 = ssub.s32 %s14, 2
      %s21 = sadd.s32 %s14, 1
      %s22 = ssub.s32 %s14, %s21
      %p23 = scmp.eq.s32.totalorder %s22, 0
      %s25 = sadd.s32 %s24, 1
      %s26 = scalar_select %p23, %s24, %s25
      %p29 = pneg %p23
      %p30 = scmp.eq.s32.totalorder %s14, 1
      %p31 = por %p29, %p30
      %p32 = scmp.ne.s32.totalorder %s24, %s27
      %p33 = scmp.eq.s32.totalorder %s14, 0
      %p34 = por %p32, %p33
      %p35 = scmp.ne.s32.totalorder %s24, %s27
      %p36 = scmp.eq.s32.totalorder %s19, 1
      %p37 = por %p35, %p36
      %p38 = scmp.ne.s32.totalorder %s27, %s28
      %p39 = scmp.eq.s32.totalorder %s19, 0
      %p40 = por %p38, %p39
      %p41 = scmp.ne.s32.totalorder %s27, %s28
      %p42 = scmp.eq.s32.totalorder %s20, 1
      %p43 = por %p41, %p42
      %p45 = scmp.ne.s32.totalorder %s28, %s44
      %p46 = scmp.eq.s32.totalorder %s20, 0
      %p47 = por %p45, %p46
      %s48 = ssub.s32 %s14, %s21
      %p49 = scmp.eq.s32.totalorder %s48, 0
      %s51 = sadd.s32 %s50, 1
      %s52 = scalar_select %p49, %s50, %s51
      %p55 = pneg %p49
      %p56 = scmp.eq.s32.totalorder %s14, 1
      %p57 = por %p55, %p56
      %p58 = scmp.ne.s32.totalorder %s50, %s53
      %p59 = scmp.eq.s32.totalorder %s14, 0
      %p60 = por %p58, %p59
      %p61 = scmp.ne.s32.totalorder %s50, %s53
      %p62 = scmp.eq.s32.totalorder %s19, 1
      %p63 = por %p61, %p62
      %p64 = scmp.ne.s32.totalorder %s53, %s54
      %p65 = scmp.eq.s32.totalorder %s19, 0
      %p66 = por %p64, %p65
      %p67 = scmp.ne.s32.totalorder %s53, %s54
      %p68 = scmp.eq.s32.totalorder %s20, 1
      %p69 = por %p67, %p68
      %p71 = scmp.ne.s32.totalorder %s54, %s70
      %p72 = scmp.eq.s32.totalorder %s20, 0
      %p73 = por %p71, %p72
      %s75 = sadd.s32 %s74, 1
      %p78 = scmp.eq.s32.totalorder %s14, 1
      %p79 = scmp.ne.s32.totalorder %s74, %s76
      %p80 = scmp.eq.s32.totalorder %s14, 0
      %p81 = por %p79, %p80
      %p82 = scmp.ne.s32.totalorder %s74, %s76
      %p83 = scmp.eq.s32.totalorder %s19, 1
      %p84 = por %p82, %p83
      %p85 = scmp.ne.s32.totalorder %s76, %s77
      %p86 = scmp.eq.s32.totalorder %s19, 0
      %p87 = por %p85, %p86
      %p88 = scmp.ne.s32.totalorder %s76, %s77
      %p89 = scmp.eq.s32.totalorder %s20, 1
      %p90 = por %p88, %p89
      %p92 = scmp.ne.s32.totalorder %s77, %s91
      %p93 = scmp.eq.s32.totalorder %s20, 0
      %p94 = por %p92, %p93
      %s96 = sadd.s32 %s95, 1
      %p99 = scmp.eq.s32.totalorder %s14, 1
      %p100 = scmp.ne.s32.totalorder %s95, %s97
      %p101 = scmp.eq.s32.totalorder %s14, 0
      %p102 = por %p100, %p101
      %p103 = scmp.ne.s32.totalorder %s95, %s97
      %p104 = scmp.eq.s32.totalorder %s19, 1
      %p105 = por %p103, %p104
      %p106 = scmp.ne.s32.totalorder %s97, %s98
      %p107 = scmp.eq.s32.totalorder %s19, 0
      %p108 = por %p106, %p107
      %p109 = scmp.ne.s32.totalorder %s97, %s98
      %p110 = scmp.eq.s32.totalorder %s20, 1
      %p111 = por %p109, %p110
      %p113 = scmp.ne.s32.totalorder %s98, %s112
      %p114 = scmp.eq.s32.totalorder %s20, 0
      %p115 = por %p113, %p114
      %s117 = sadd.s32 %s116, 1
      %p120 = scmp.eq.s32.totalorder %s14, 1
      %p121 = scmp.ne.s32.totalorder %s116, %s118
      %p122 = scmp.eq.s32.totalorder %s14, 0
      %p123 = por %p121, %p122
      %p124 = scmp.ne.s32.totalorder %s116, %s118
      %p125 = scmp.eq.s32.totalorder %s19, 1
      %p126 = por %p124, %p125
      %p127 = scmp.ne.s32.totalorder %s118, %s119
      %p128 = scmp.eq.s32.totalorder %s19, 0
      %p129 = por %p127, %p128
      %p130 = scmp.ne.s32.totalorder %s118, %s119
      %p131 = scmp.eq.s32.totalorder %s20, 1
      %p132 = por %p130, %p131
      %p134 = scmp.ne.s32.totalorder %s119, %s133
      %p135 = scmp.eq.s32.totalorder %s20, 0
      %p136 = por %p134, %p135
      %s137 = ssub.s32 %s14, %s21
      %p138 = scmp.eq.s32.totalorder %s137, 0
      %s140 = sadd.s32 %s139, 1
      %s141 = scalar_select %p138, %s139, %s140
      %p144 = pneg %p138
      %p145 = scmp.eq.s32.totalorder %s14, 1
      %p146 = por %p144, %p145
      %p147 = scmp.ne.s32.totalorder %s139, %s142
      %p148 = scmp.eq.s32.totalorder %s14, 0
      %p149 = por %p147, %p148
      %p150 = scmp.ne.s32.totalorder %s139, %s142
      %p151 = scmp.eq.s32.totalorder %s19, 1
      %p152 = por %p150, %p151
      %p153 = scmp.ne.s32.totalorder %s142, %s143
      %p154 = scmp.eq.s32.totalorder %s19, 0
      %p155 = por %p153, %p154
      %p156 = scmp.ne.s32.totalorder %s142, %s143
      %p157 = scmp.eq.s32.totalorder %s20, 1
      %p158 = por %p156, %p157
      %p160 = scmp.ne.s32.totalorder %s143, %s159
      %p161 = scmp.eq.s32.totalorder %s20, 0
      %p162 = por %p160, %p161
      %p163 = scmp.le.s32.totalorder 1, %s14
      %p164 = scmp.lt.s32.totalorder %s14, 3
      %p165 = pnand %p163, %p164
      %p166 = pneg %p165
      // Predicated region
      $region9: #{tpu_custom_call.1} parent=5 // pred_check
        _
      $region10: #{tpu_custom_call.1} parent=5 // pred_check_branch
        %168 = sbr.rel (%p165) target = $region12
      $region11: #{tpu_custom_call.1} parent=5 // pred_region
        %s169 = ssub.s32 %s14, 1
        // Predicated region
        $region13: #{tpu_custom_call.1} parent=11 // pred_check
          %p170 = pneg %p87
        $region14: #{tpu_custom_call.1} parent=11 // pred_check_branch
          %172 = sbr.rel (%p170) target = $region16
        $region15: #{tpu_custom_call.1} parent=11 // pred_region
          _
        $region16: #{tpu_custom_call.1} parent=11 // pred_fallthru
          _
        // Predicated region
        $region17: #{tpu_custom_call.1} parent=11 // pred_check
          %p173 = pneg %p108
        $region18: #{tpu_custom_call.1} parent=11 // pred_check_branch
          %175 = sbr.rel (%p173) target = $region20
        $region19: #{tpu_custom_call.1} parent=11 // pred_region
          _
        $region20: #{tpu_custom_call.1} parent=11 // pred_fallthru
          _
        // Predicated region
        $region21: #{tpu_custom_call.1} parent=11 // pred_check
          %p176 = pneg %p129
        $region22: #{tpu_custom_call.1} parent=11 // pred_check_branch
          %178 = sbr.rel (%p176) target = $region24
        $region23: #{tpu_custom_call.1} parent=11 // pred_region
          _
        $region24: #{tpu_custom_call.1} parent=11 // pred_fallthru
          _
      $region12: #{tpu_custom_call.1} parent=5 // pred_fallthru
        _
      %p179 = scmp.lt.s32.totalorder %s14, 2
      // Predicated region
      $region25: #{tpu_custom_call.1} parent=5 // pred_check
        %p180 = pneg %p179
      $region26: #{tpu_custom_call.1} parent=5 // pred_check_branch
        %182 = sbr.rel (%p180) target = $region28
      $region27: #{tpu_custom_call.1} parent=5 // pred_region
        // Predicated region
        $region29: #{tpu_custom_call.1} parent=27 // pred_check
          %p183 = pneg %p34
        $region30: #{tpu_custom_call.1} parent=27 // pred_check_branch
          %185 = sbr.rel (%p183) target = $region32
        $region31: #{tpu_custom_call.1} parent=27 // pred_region
          %s186 = smul.u32 8, %s14
          %p187 = scmp.lt.s32.totalorder %s186, 15
          %s188 = scalar_select %p187, %s186, 15
          %s189 = smul.addr %s188, 32
          %s190 = smul.addr %s189, 8
          %s191 = scalar_lea.vmem %s0, %s190
          %s192 = smul.u32 8, %s14
        $region32: #{tpu_custom_call.1} parent=27 // pred_fallthru
          _
        // Predicated region
        $region33: #{tpu_custom_call.1} parent=27 // pred_check
          %p193 = pneg %p60
        $region34: #{tpu_custom_call.1} parent=27 // pred_check_branch
          %195 = sbr.rel (%p193) target = $region36
        $region35: #{tpu_custom_call.1} parent=27 // pred_region
          %p196 = scmp.lt.s32.totalorder %s14, 1
          %s197 = scalar_select %p196, %s14, 1
          %s198 = smul.addr %s197, 8
          %s199 = scalar_lea.vmem %s1, %s198
        $region36: #{tpu_custom_call.1} parent=27 // pred_fallthru
          _
      $region28: #{tpu_custom_call.1} parent=5 // pred_fallthru
        _
      %p200 = scmp.le.s32.totalorder 1, %s14
      %p201 = scmp.lt.s32.totalorder %s14, 3
      %p202 = pnand %p200, %p201
      %p203 = pneg %p202
      // Predicated region
      $region37: #{tpu_custom_call.1} parent=5 // pred_check
        _
      $region38: #{tpu_custom_call.1} parent=5 // pred_check_branch
        %205 = sbr.rel (%p202) target = $region40
      $region39: #{tpu_custom_call.1} parent=5 // pred_region
        %s206 = ssub.s32 %s14, 1
        %s207 = smul.u32 8, %s19
        %p208 = scmp.lt.s32.totalorder %s207, 15
        %s209 = scalar_select %p208, %s207, 15
        %s210 = smul.addr %s209, 32
        %s211 = smul.addr %s210, 8
        %s212 = scalar_lea.vmem %s0, %s211
        %p213 = pneg %p40
        %p214 = pneg %p37
        %p215 = scmp.lt.s32.totalorder %s19, 1
        %s216 = scalar_select %p215, %s19, 1
        %s217 = smul.addr %s216, 8
        %s218 = scalar_lea.vmem %s1, %s217
        %p219 = pneg %p66
        %p220 = pneg %p63
        %p221 = pneg %p87
        %p222 = pneg %p84
        %p223 = pneg %p108
        %p224 = pneg %p105
        %p225 = pneg %p129
        %p226 = pneg %p126
        %p227 = pneg %p155
        %p228 = pneg %p152
        %s229 = sand.u32 %s142, 1
        %s230 = scalar_lea.sflag [#allocation3], %s229
        %s231 = sand.u32 %s142, 1
        %s232 = smul.addr %s231, 8
        %s233 = scalar_lea.vmem [#allocation2], %s232
        %s234 = smul.u32 8, %s19
        %p235 = scmp.lt.s32.totalorder %s234, 15
        %s236 = scalar_select %p235, %s234, 15
        %s237 = smul.addr %s236, 32
        %s238 = smul.addr %s237, 8
        %s239 = scalar_lea.vmem %s0, %s238
        %s240 = smul.u32 8, %s19
        %p241 = scmp.lt.s32.totalorder %s19, 1
        %s242 = scalar_select %p241, %s19, 1
        %s243 = smul.addr %s242, 8
        %s244 = scalar_lea.vmem %s1, %s243
        %v245 = vld [vmem:[%s239] sm:$0xff]
        %v246 = vld [vmem:[%s239 + $0x8] sm:$0xff]
        %v247 = vld [vmem:[%s239 + $0x10] sm:$0xff]
        %v248 = vld [vmem:[%s239 + $0x18] sm:$0xff]
        %v249 = vld [vmem:[%s239 + $0x20] sm:$0xff]
        %v250 = vld [vmem:[%s239 + $0x28] sm:$0xff]
        %v251 = vld [vmem:[%s239 + $0x30] sm:$0xff]
        %v252 = vld [vmem:[%s239 + $0x38] sm:$0xff]
        %v253 = vld [vmem:[%s239 + $0x40] sm:$0xff]
        %v254 = vld [vmem:[%s239 + $0x48] sm:$0xff]
        %v255 = vld [vmem:[%s239 + $0x50] sm:$0xff]
        %v256 = vld [vmem:[%s239 + $0x58] sm:$0xff]
        %v257 = vld [vmem:[%s239 + $0x60] sm:$0xff]
        %v258 = vld [vmem:[%s239 + $0x68] sm:$0xff]
        %v259 = vld [vmem:[%s239 + $0x70] sm:$0xff]
        %v260 = vld [vmem:[%s239 + $0x78] sm:$0xff]
        %v261 = vld [vmem:[%s239 + $0x80] sm:$0xff]
        %v262 = vld [vmem:[%s239 + $0x88] sm:$0xff]
        %v263 = vld [vmem:[%s239 + $0x90] sm:$0xff]
        %v264 = vld [vmem:[%s239 + $0x98] sm:$0xff]
        %v265 = vld [vmem:[%s239 + $0xa0] sm:$0xff]
        %v266 = vld [vmem:[%s239 + $0xa8] sm:$0xff]
        %v267 = vld [vmem:[%s239 + $0xb0] sm:$0xff]
        %v268 = vld [vmem:[%s239 + $0xb8] sm:$0xff]
        %v269 = vld [vmem:[%s239 + $0xc0] sm:$0xff]
        %v270 = vld [vmem:[%s239 + $0xc8] sm:$0xff]
        %v271 = vld [vmem:[%s239 + $0xd0] sm:$0xff]
        %v272 = vld [vmem:[%s239 + $0xd8] sm:$0xff]
        %v273 = vld [vmem:[%s239 + $0xe0] sm:$0xff]
        %v274 = vld [vmem:[%s239 + $0xe8] sm:$0xff]
        %v275 = vld [vmem:[%s239 + $0xf0] sm:$0xff]
        %v276 = vld [vmem:[%s239 + $0xf8] sm:$0xff]
        %v277 = vld [vmem:[%s239 + $0x100] sm:$0xff]
        %v278 = vld [vmem:[%s239 + $0x108] sm:$0xff]
        %v279 = vld [vmem:[%s239 + $0x110] sm:$0xff]
        %v280 = vld [vmem:[%s239 + $0x118] sm:$0xff]
        %v281 = vld [vmem:[%s239 + $0x120] sm:$0xff]
        %v282 = vld [vmem:[%s239 + $0x128] sm:$0xff]
        %v283 = vld [vmem:[%s239 + $0x130] sm:$0xff]
        %v284 = vld [vmem:[%s239 + $0x138] sm:$0xff]
        %v285 = vld [vmem:[%s239 + $0x140] sm:$0xff]
        %v286 = vld [vmem:[%s239 + $0x148] sm:$0xff]
        %v287 = vld [vmem:[%s239 + $0x150] sm:$0xff]
        %v288 = vld [vmem:[%s239 + $0x158] sm:$0xff]
        %v289 = vld [vmem:[%s239 + $0x160] sm:$0xff]
        %v290 = vld [vmem:[%s239 + $0x168] sm:$0xff]
        %v291 = vld [vmem:[%s239 + $0x170] sm:$0xff]
        %v292 = vld [vmem:[%s239 + $0x178] sm:$0xff]
        %v293 = vld [vmem:[%s239 + $0x180] sm:$0xff]
        %v294 = vld [vmem:[%s239 + $0x188] sm:$0xff]
        %v295 = vld [vmem:[%s239 + $0x190] sm:$0xff]
        %v296 = vld [vmem:[%s239 + $0x198] sm:$0xff]
        %v297 = vld [vmem:[%s239 + $0x1a0] sm:$0xff]
        %v298 = vld [vmem:[%s239 + $0x1a8] sm:$0xff]
        %v299 = vld [vmem:[%s239 + $0x1b0] sm:$0xff]
        %v300 = vld [vmem:[%s239 + $0x1b8] sm:$0xff]
        %v301 = vld [vmem:[%s239 + $0x1c0] sm:$0xff]
        %v302 = vld [vmem:[%s239 + $0x1c8] sm:$0xff]
        %v303 = vld [vmem:[%s239 + $0x1d0] sm:$0xff]
        %v304 = vld [vmem:[%s239 + $0x1d8] sm:$0xff]
        %v305 = vld [vmem:[%s239 + $0x1e0] sm:$0xff]
        %v306 = vld [vmem:[%s239 + $0x1e8] sm:$0xff]
        %v307 = vld [vmem:[%s239 + $0x1f0] sm:$0xff]
        %v308 = vld [vmem:[%s239 + $0x1f8] sm:$0xff]
        %v309 = vld [vmem:[%s239 + $0x200] sm:$0xff]
        %v310 = vld [vmem:[%s239 + $0x208] sm:$0xff]
        %v311 = vld [vmem:[%s239 + $0x210] sm:$0xff]
        %v312 = vld [vmem:[%s239 + $0x218] sm:$0xff]
        %v313 = vld [vmem:[%s239 + $0x220] sm:$0xff]
        %v314 = vld [vmem:[%s239 + $0x228] sm:$0xff]
        %v315 = vld [vmem:[%s239 + $0x230] sm:$0xff]
        %v316 = vld [vmem:[%s239 + $0x238] sm:$0xff]
        %v317 = vld [vmem:[%s239 + $0x240] sm:$0xff]
        %v318 = vld [vmem:[%s239 + $0x248] sm:$0xff]
        %v319 = vld [vmem:[%s239 + $0x250] sm:$0xff]
        %v320 = vld [vmem:[%s239 + $0x258] sm:$0xff]
        %v321 = vld [vmem:[%s239 + $0x260] sm:$0xff]
        %v322 = vld [vmem:[%s239 + $0x268] sm:$0xff]
        %v323 = vld [vmem:[%s239 + $0x270] sm:$0xff]
        %v324 = vld [vmem:[%s239 + $0x278] sm:$0xff]
        %v325 = vld [vmem:[%s239 + $0x280] sm:$0xff]
        %v326 = vld [vmem:[%s239 + $0x288] sm:$0xff]
        %v327 = vld [vmem:[%s239 + $0x290] sm:$0xff]
        %v328 = vld [vmem:[%s239 + $0x298] sm:$0xff]
        %v329 = vld [vmem:[%s239 + $0x2a0] sm:$0xff]
        %v330 = vld [vmem:[%s239 + $0x2a8] sm:$0xff]
        %v331 = vld [vmem:[%s239 + $0x2b0] sm:$0xff]
        %v332 = vld [vmem:[%s239 + $0x2b8] sm:$0xff]
        %v333 = vld [vmem:[%s239 + $0x2c0] sm:$0xff]
        %v334 = vld [vmem:[%s239 + $0x2c8] sm:$0xff]
        %v335 = vld [vmem:[%s239 + $0x2d0] sm:$0xff]
        %v336 = vld [vmem:[%s239 + $0x2d8] sm:$0xff]
        %v337 = vld [vmem:[%s239 + $0x2e0] sm:$0xff]
        %v338 = vld [vmem:[%s239 + $0x2e8] sm:$0xff]
        %v339 = vld [vmem:[%s239 + $0x2f0] sm:$0xff]
        %v340 = vld [vmem:[%s239 + $0x2f8] sm:$0xff]
        %v341 = vld [vmem:[%s239 + $0x300] sm:$0xff]
        %v342 = vld [vmem:[%s239 + $0x308] sm:$0xff]
        %v343 = vld [vmem:[%s239 + $0x310] sm:$0xff]
        %v344 = vld [vmem:[%s239 + $0x318] sm:$0xff]
        %v345 = vld [vmem:[%s239 + $0x320] sm:$0xff]
        %v346 = vld [vmem:[%s239 + $0x328] sm:$0xff]
        %v347 = vld [vmem:[%s239 + $0x330] sm:$0xff]
        %v348 = vld [vmem:[%s239 + $0x338] sm:$0xff]
        %v349 = vld [vmem:[%s239 + $0x340] sm:$0xff]
        %v350 = vld [vmem:[%s239 + $0x348] sm:$0xff]
        %v351 = vld [vmem:[%s239 + $0x350] sm:$0xff]
        %v352 = vld [vmem:[%s239 + $0x358] sm:$0xff]
        %v353 = vld [vmem:[%s239 + $0x360] sm:$0xff]
        %v354 = vld [vmem:[%s239 + $0x368] sm:$0xff]
        %v355 = vld [vmem:[%s239 + $0x370] sm:$0xff]
        %v356 = vld [vmem:[%s239 + $0x378] sm:$0xff]
        %v357 = vld [vmem:[%s239 + $0x380] sm:$0xff]
        %v358 = vld [vmem:[%s239 + $0x388] sm:$0xff]
        %v359 = vld [vmem:[%s239 + $0x390] sm:$0xff]
        %v360 = vld [vmem:[%s239 + $0x398] sm:$0xff]
        %v361 = vld [vmem:[%s239 + $0x3a0] sm:$0xff]
        %v362 = vld [vmem:[%s239 + $0x3a8] sm:$0xff]
        %v363 = vld [vmem:[%s239 + $0x3b0] sm:$0xff]
        %v364 = vld [vmem:[%s239 + $0x3b8] sm:$0xff]
        %v365 = vld [vmem:[%s239 + $0x3c0] sm:$0xff]
        %v366 = vld [vmem:[%s239 + $0x3c8] sm:$0xff]
        %v367 = vld [vmem:[%s239 + $0x3d0] sm:$0xff]
        %v368 = vld [vmem:[%s239 + $0x3d8] sm:$0xff]
        %v369 = vld [vmem:[%s239 + $0x3e0] sm:$0xff]
        %v370 = vld [vmem:[%s239 + $0x3e8] sm:$0xff]
        %v371 = vld [vmem:[%s239 + $0x3f0] sm:$0xff]
        %v372 = vld [vmem:[%s239 + $0x3f8] sm:$0xff]
        %v373 = vld [vmem:[%s239 + $0x400] sm:$0xff]
        %v374 = vld [vmem:[%s239 + $0x408] sm:$0xff]
        %v375 = vld [vmem:[%s239 + $0x410] sm:$0xff]
        %v376 = vld [vmem:[%s239 + $0x418] sm:$0xff]
        %v377 = vld [vmem:[%s239 + $0x420] sm:$0xff]
        %v378 = vld [vmem:[%s239 + $0x428] sm:$0xff]
        %v379 = vld [vmem:[%s239 + $0x430] sm:$0xff]
        %v380 = vld [vmem:[%s239 + $0x438] sm:$0xff]
        %v381 = vld [vmem:[%s239 + $0x440] sm:$0xff]
        %v382 = vld [vmem:[%s239 + $0x448] sm:$0xff]
        %v383 = vld [vmem:[%s239 + $0x450] sm:$0xff]
        %v384 = vld [vmem:[%s239 + $0x458] sm:$0xff]
        %v385 = vld [vmem:[%s239 + $0x460] sm:$0xff]
        %v386 = vld [vmem:[%s239 + $0x468] sm:$0xff]
        %v387 = vld [vmem:[%s239 + $0x470] sm:$0xff]
        %v388 = vld [vmem:[%s239 + $0x478] sm:$0xff]
        %v389 = vld [vmem:[%s239 + $0x480] sm:$0xff]
        %v390 = vld [vmem:[%s239 + $0x488] sm:$0xff]
        %v391 = vld [vmem:[%s239 + $0x490] sm:$0xff]
        %v392 = vld [vmem:[%s239 + $0x498] sm:$0xff]
        %v393 = vld [vmem:[%s239 + $0x4a0] sm:$0xff]
        %v394 = vld [vmem:[%s239 + $0x4a8] sm:$0xff]
        %v395 = vld [vmem:[%s239 + $0x4b0] sm:$0xff]
        %v396 = vld [vmem:[%s239 + $0x4b8] sm:$0xff]
        %v397 = vld [vmem:[%s239 + $0x4c0] sm:$0xff]
        %v398 = vld [vmem:[%s239 + $0x4c8] sm:$0xff]
        %v399 = vld [vmem:[%s239 + $0x4d0] sm:$0xff]
        %v400 = vld [vmem:[%s239 + $0x4d8] sm:$0xff]
        %v401 = vld [vmem:[%s239 + $0x4e0] sm:$0xff]
        %v402 = vld [vmem:[%s239 + $0x4e8] sm:$0xff]
        %v403 = vld [vmem:[%s239 + $0x4f0] sm:$0xff]
        %v404 = vld [vmem:[%s239 + $0x4f8] sm:$0xff]
        %v405 = vld [vmem:[%s239 + $0x500] sm:$0xff]
        %v406 = vld [vmem:[%s239 + $0x508] sm:$0xff]
        %v407 = vld [vmem:[%s239 + $0x510] sm:$0xff]
        %v408 = vld [vmem:[%s239 + $0x518] sm:$0xff]
        %v409 = vld [vmem:[%s239 + $0x520] sm:$0xff]
        %v410 = vld [vmem:[%s239 + $0x528] sm:$0xff]
        %v411 = vld [vmem:[%s239 + $0x530] sm:$0xff]
        %v412 = vld [vmem:[%s239 + $0x538] sm:$0xff]
        %v413 = vld [vmem:[%s239 + $0x540] sm:$0xff]
        %v414 = vld [vmem:[%s239 + $0x548] sm:$0xff]
        %v415 = vld [vmem:[%s239 + $0x550] sm:$0xff]
        %v416 = vld [vmem:[%s239 + $0x558] sm:$0xff]
        %v417 = vld [vmem:[%s239 + $0x560] sm:$0xff]
        %v418 = vld [vmem:[%s239 + $0x568] sm:$0xff]
        %v419 = vld [vmem:[%s239 + $0x570] sm:$0xff]
        %v420 = vld [vmem:[%s239 + $0x578] sm:$0xff]
        %v421 = vld [vmem:[%s239 + $0x580] sm:$0xff]
        %v422 = vld [vmem:[%s239 + $0x588] sm:$0xff]
        %v423 = vld [vmem:[%s239 + $0x590] sm:$0xff]
        %v424 = vld [vmem:[%s239 + $0x598] sm:$0xff]
        %v425 = vld [vmem:[%s239 + $0x5a0] sm:$0xff]
        %v426 = vld [vmem:[%s239 + $0x5a8] sm:$0xff]
        %v427 = vld [vmem:[%s239 + $0x5b0] sm:$0xff]
        %v428 = vld [vmem:[%s239 + $0x5b8] sm:$0xff]
        %v429 = vld [vmem:[%s239 + $0x5c0] sm:$0xff]
        %v430 = vld [vmem:[%s239 + $0x5c8] sm:$0xff]
        %v431 = vld [vmem:[%s239 + $0x5d0] sm:$0xff]
        %v432 = vld [vmem:[%s239 + $0x5d8] sm:$0xff]
        %v433 = vld [vmem:[%s239 + $0x5e0] sm:$0xff]
        %v434 = vld [vmem:[%s239 + $0x5e8] sm:$0xff]
        %v435 = vld [vmem:[%s239 + $0x5f0] sm:$0xff]
        %v436 = vld [vmem:[%s239 + $0x5f8] sm:$0xff]
        %v437 = vld [vmem:[%s239 + $0x600] sm:$0xff]
        %v438 = vld [vmem:[%s239 + $0x608] sm:$0xff]
        %v439 = vld [vmem:[%s239 + $0x610] sm:$0xff]
        %v440 = vld [vmem:[%s239 + $0x618] sm:$0xff]
        %v441 = vld [vmem:[%s239 + $0x620] sm:$0xff]
        %v442 = vld [vmem:[%s239 + $0x628] sm:$0xff]
        %v443 = vld [vmem:[%s239 + $0x630] sm:$0xff]
        %v444 = vld [vmem:[%s239 + $0x638] sm:$0xff]
        %v445 = vld [vmem:[%s239 + $0x640] sm:$0xff]
        %v446 = vld [vmem:[%s239 + $0x648] sm:$0xff]
        %v447 = vld [vmem:[%s239 + $0x650] sm:$0xff]
        %v448 = vld [vmem:[%s239 + $0x658] sm:$0xff]
        %v449 = vld [vmem:[%s239 + $0x660] sm:$0xff]
        %v450 = vld [vmem:[%s239 + $0x668] sm:$0xff]
        %v451 = vld [vmem:[%s239 + $0x670] sm:$0xff]
        %v452 = vld [vmem:[%s239 + $0x678] sm:$0xff]
        %v453 = vld [vmem:[%s239 + $0x680] sm:$0xff]
        %v454 = vld [vmem:[%s239 + $0x688] sm:$0xff]
        %v455 = vld [vmem:[%s239 + $0x690] sm:$0xff]
        %v456 = vld [vmem:[%s239 + $0x698] sm:$0xff]
        %v457 = vld [vmem:[%s239 + $0x6a0] sm:$0xff]
        %v458 = vld [vmem:[%s239 + $0x6a8] sm:$0xff]
        %v459 = vld [vmem:[%s239 + $0x6b0] sm:$0xff]
        %v460 = vld [vmem:[%s239 + $0x6b8] sm:$0xff]
        %v461 = vld [vmem:[%s239 + $0x6c0] sm:$0xff]
        %v462 = vld [vmem:[%s239 + $0x6c8] sm:$0xff]
        %v463 = vld [vmem:[%s239 + $0x6d0] sm:$0xff]
        %v464 = vld [vmem:[%s239 + $0x6d8] sm:$0xff]
        %v465 = vld [vmem:[%s239 + $0x6e0] sm:$0xff]
        %v466 = vld [vmem:[%s239 + $0x6e8] sm:$0xff]
        %v467 = vld [vmem:[%s239 + $0x6f0] sm:$0xff]
        %v468 = vld [vmem:[%s239 + $0x6f8] sm:$0xff]
        %v469 = vld [vmem:[%s239 + $0x700] sm:$0xff]
        %v470 = vld [vmem:[%s239 + $0x708] sm:$0xff]
        %v471 = vld [vmem:[%s239 + $0x710] sm:$0xff]
        %v472 = vld [vmem:[%s239 + $0x718] sm:$0xff]
        %v473 = vld [vmem:[%s239 + $0x720] sm:$0xff]
        %v474 = vld [vmem:[%s239 + $0x728] sm:$0xff]
        %v475 = vld [vmem:[%s239 + $0x730] sm:$0xff]
        %v476 = vld [vmem:[%s239 + $0x738] sm:$0xff]
        %v477 = vld [vmem:[%s239 + $0x740] sm:$0xff]
        %v478 = vld [vmem:[%s239 + $0x748] sm:$0xff]
        %v479 = vld [vmem:[%s239 + $0x750] sm:$0xff]
        %v480 = vld [vmem:[%s239 + $0x758] sm:$0xff]
        %v481 = vld [vmem:[%s239 + $0x760] sm:$0xff]
        %v482 = vld [vmem:[%s239 + $0x768] sm:$0xff]
        %v483 = vld [vmem:[%s239 + $0x770] sm:$0xff]
        %v484 = vld [vmem:[%s239 + $0x778] sm:$0xff]
        %v485 = vld [vmem:[%s239 + $0x780] sm:$0xff]
        %v486 = vld [vmem:[%s239 + $0x788] sm:$0xff]
        %v487 = vld [vmem:[%s239 + $0x790] sm:$0xff]
        %v488 = vld [vmem:[%s239 + $0x798] sm:$0xff]
        %v489 = vld [vmem:[%s239 + $0x7a0] sm:$0xff]
        %v490 = vld [vmem:[%s239 + $0x7a8] sm:$0xff]
        %v491 = vld [vmem:[%s239 + $0x7b0] sm:$0xff]
        %v492 = vld [vmem:[%s239 + $0x7b8] sm:$0xff]
        %v493 = vld [vmem:[%s239 + $0x7c0] sm:$0xff]
        %v494 = vld [vmem:[%s239 + $0x7c8] sm:$0xff]
        %v495 = vld [vmem:[%s239 + $0x7d0] sm:$0xff]
        %v496 = vld [vmem:[%s239 + $0x7d8] sm:$0xff]
        %v497 = vld [vmem:[%s239 + $0x7e0] sm:$0xff]
        %v498 = vld [vmem:[%s239 + $0x7e8] sm:$0xff]
        %v499 = vld [vmem:[%s239 + $0x7f0] sm:$0xff]
        %v500 = vld [vmem:[%s239 + $0x7f8] sm:$0xff]
        %501 = vxpose.xlu0.b32.start [1/16] %v245, 128
        %502 = vxpose.xlu0.b32.cont [2/16] %v246, 128
        %503 = vxpose.xlu0.b32.cont [3/16] %v247, 128
        %504 = vxpose.xlu0.b32.cont [4/16] %v248, 128
        %505 = vxpose.xlu0.b32.cont [5/16] %v249, 128
        %506 = vxpose.xlu0.b32.cont [6/16] %v250, 128
        %507 = vxpose.xlu0.b32.cont [7/16] %v251, 128
        %508 = vxpose.xlu0.b32.cont [8/16] %v252, 128
        %509 = vxpose.xlu0.b32.cont [9/16] %v253, 128
        %510 = vxpose.xlu0.b32.cont [10/16] %v254, 128
        %511 = vxpose.xlu0.b32.cont [11/16] %v255, 128
        %512 = vxpose.xlu0.b32.cont [12/16] %v256, 128
        %513 = vxpose.xlu0.b32.cont [13/16] %v257, 128
        %514 = vxpose.xlu0.b32.cont [14/16] %v258, 128
        %515 = vxpose.xlu0.b32.cont [15/16] %v259, 128
        %516 = vxpose.xlu0.b32.end [16/16] %v260, 128
        %v517 = vpop.trf.xlu0
        %v518 = vpop.trf.xlu0
        %v519 = vpop.trf.xlu0
        %v520 = vpop.trf.xlu0
        %v521 = vpop.trf.xlu0
        %v522 = vpop.trf.xlu0
        %v523 = vpop.trf.xlu0
        %v524 = vpop.trf.xlu0
        %v525 = vpop.trf.xlu0
        %v526 = vpop.trf.xlu0
        %v527 = vpop.trf.xlu0
        %v528 = vpop.trf.xlu0
        %v529 = vpop.trf.xlu0
        %v530 = vpop.trf.xlu0
        %v531 = vpop.trf.xlu0
        %v532 = vpop.trf.xlu0
        %533 = vxpose.xlu0.b32.start [1/16] %v261, 128
        %534 = vxpose.xlu0.b32.cont [2/16] %v262, 128
        %535 = vxpose.xlu0.b32.cont [3/16] %v263, 128
        %536 = vxpose.xlu0.b32.cont [4/16] %v264, 128
        %537 = vxpose.xlu0.b32.cont [5/16] %v265, 128
        %538 = vxpose.xlu0.b32.cont [6/16] %v266, 128
        %539 = vxpose.xlu0.b32.cont [7/16] %v267, 128
        %540 = vxpose.xlu0.b32.cont [8/16] %v268, 128
        %541 = vxpose.xlu0.b32.cont [9/16] %v269, 128
        %542 = vxpose.xlu0.b32.cont [10/16] %v270, 128
        %543 = vxpose.xlu0.b32.cont [11/16] %v271, 128
        %544 = vxpose.xlu0.b32.cont [12/16] %v272, 128
        %545 = vxpose.xlu0.b32.cont [13/16] %v273, 128
        %546 = vxpose.xlu0.b32.cont [14/16] %v274, 128
        %547 = vxpose.xlu0.b32.cont [15/16] %v275, 128
        %548 = vxpose.xlu0.b32.end [16/16] %v276, 128
        %v549 = vpop.trf.xlu0
        %v550 = vpop.trf.xlu0
        %v551 = vpop.trf.xlu0
        %v552 = vpop.trf.xlu0
        %v553 = vpop.trf.xlu0
        %v554 = vpop.trf.xlu0
        %v555 = vpop.trf.xlu0
        %v556 = vpop.trf.xlu0
        %v557 = vpop.trf.xlu0
        %v558 = vpop.trf.xlu0
        %v559 = vpop.trf.xlu0
        %v560 = vpop.trf.xlu0
        %v561 = vpop.trf.xlu0
        %v562 = vpop.trf.xlu0
        %v563 = vpop.trf.xlu0
        %v564 = vpop.trf.xlu0
        %565 = vxpose.xlu0.b32.start [1/16] %v277, 128
        %566 = vxpose.xlu0.b32.cont [2/16] %v278, 128
        %567 = vxpose.xlu0.b32.cont [3/16] %v279, 128
        %568 = vxpose.xlu0.b32.cont [4/16] %v280, 128
        %569 = vxpose.xlu0.b32.cont [5/16] %v281, 128
        %570 = vxpose.xlu0.b32.cont [6/16] %v282, 128
        %571 = vxpose.xlu0.b32.cont [7/16] %v283, 128
        %572 = vxpose.xlu0.b32.cont [8/16] %v284, 128
        %573 = vxpose.xlu0.b32.cont [9/16] %v285, 128
        %574 = vxpose.xlu0.b32.cont [10/16] %v286, 128
        %575 = vxpose.xlu0.b32.cont [11/16] %v287, 128
        %576 = vxpose.xlu0.b32.cont [12/16] %v288, 128
        %577 = vxpose.xlu0.b32.cont [13/16] %v289, 128
        %578 = vxpose.xlu0.b32.cont [14/16] %v290, 128
        %579 = vxpose.xlu0.b32.cont [15/16] %v291, 128
        %580 = vxpose.xlu0.b32.end [16/16] %v292, 128
        %v581 = vpop.trf.xlu0
        %v582 = vpop.trf.xlu0
        %v583 = vpop.trf.xlu0
        %v584 = vpop.trf.xlu0
        %v585 = vpop.trf.xlu0
        %v586 = vpop.trf.xlu0
        %v587 = vpop.trf.xlu0
        %v588 = vpop.trf.xlu0
        %v589 = vpop.trf.xlu0
        %v590 = vpop.trf.xlu0
        %v591 = vpop.trf.xlu0
        %v592 = vpop.trf.xlu0
        %v593 = vpop.trf.xlu0
        %v594 = vpop.trf.xlu0
        %v595 = vpop.trf.xlu0
        %v596 = vpop.trf.xlu0
        %597 = vxpose.xlu0.b32.start [1/16] %v293, 128
        %598 = vxpose.xlu0.b32.cont [2/16] %v294, 128
        %599 = vxpose.xlu0.b32.cont [3/16] %v295, 128
        %600 = vxpose.xlu0.b32.cont [4/16] %v296, 128
        %601 = vxpose.xlu0.b32.cont [5/16] %v297, 128
        %602 = vxpose.xlu0.b32.cont [6/16] %v298, 128
        %603 = vxpose.xlu0.b32.cont [7/16] %v299, 128
        %604 = vxpose.xlu0.b32.cont [8/16] %v300, 128
        %605 = vxpose.xlu0.b32.cont [9/16] %v301, 128
        %606 = vxpose.xlu0.b32.cont [10/16] %v302, 128
        %607 = vxpose.xlu0.b32.cont [11/16] %v303, 128
        %608 = vxpose.xlu0.b32.cont [12/16] %v304, 128
        %609 = vxpose.xlu0.b32.cont [13/16] %v305, 128
        %610 = vxpose.xlu0.b32.cont [14/16] %v306, 128
        %611 = vxpose.xlu0.b32.cont [15/16] %v307, 128
        %612 = vxpose.xlu0.b32.end [16/16] %v308, 128
        %v613 = vpop.trf.xlu0
        %v614 = vpop.trf.xlu0
        %v615 = vpop.trf.xlu0
        %v616 = vpop.trf.xlu0
        %v617 = vpop.trf.xlu0
        %v618 = vpop.trf.xlu0
        %v619 = vpop.trf.xlu0
        %v620 = vpop.trf.xlu0
        %v621 = vpop.trf.xlu0
        %v622 = vpop.trf.xlu0
        %v623 = vpop.trf.xlu0
        %v624 = vpop.trf.xlu0
        %v625 = vpop.trf.xlu0
        %v626 = vpop.trf.xlu0
        %v627 = vpop.trf.xlu0
        %v628 = vpop.trf.xlu0
        %629 = vxpose.xlu0.b32.start [1/16] %v309, 128
        %630 = vxpose.xlu0.b32.cont [2/16] %v310, 128
        %631 = vxpose.xlu0.b32.cont [3/16] %v311, 128
        %632 = vxpose.xlu0.b32.cont [4/16] %v312, 128
        %633 = vxpose.xlu0.b32.cont [5/16] %v313, 128
        %634 = vxpose.xlu0.b32.cont [6/16] %v314, 128
        %635 = vxpose.xlu0.b32.cont [7/16] %v315, 128
        %636 = vxpose.xlu0.b32.cont [8/16] %v316, 128
        %637 = vxpose.xlu0.b32.cont [9/16] %v317, 128
        %638 = vxpose.xlu0.b32.cont [10/16] %v318, 128
        %639 = vxpose.xlu0.b32.cont [11/16] %v319, 128
        %640 = vxpose.xlu0.b32.cont [12/16] %v320, 128
        %641 = vxpose.xlu0.b32.cont [13/16] %v321, 128
        %642 = vxpose.xlu0.b32.cont [14/16] %v322, 128
        %643 = vxpose.xlu0.b32.cont [15/16] %v323, 128
        %644 = vxpose.xlu0.b32.end [16/16] %v324, 128
        %v645 = vpop.trf.xlu0
        %v646 = vpop.trf.xlu0
        %v647 = vpop.trf.xlu0
        %v648 = vpop.trf.xlu0
        %v649 = vpop.trf.xlu0
        %v650 = vpop.trf.xlu0
        %v651 = vpop.trf.xlu0
        %v652 = vpop.trf.xlu0
        %v653 = vpop.trf.xlu0
        %v654 = vpop.trf.xlu0
        %v655 = vpop.trf.xlu0
        %v656 = vpop.trf.xlu0
        %v657 = vpop.trf.xlu0
        %v658 = vpop.trf.xlu0
        %v659 = vpop.trf.xlu0
        %v660 = vpop.trf.xlu0
        %661 = vxpose.xlu0.b32.start [1/16] %v325, 128
        %662 = vxpose.xlu0.b32.cont [2/16] %v326, 128
        %663 = vxpose.xlu0.b32.cont [3/16] %v327, 128
        %664 = vxpose.xlu0.b32.cont [4/16] %v328, 128
        %665 = vxpose.xlu0.b32.cont [5/16] %v329, 128
        %666 = vxpose.xlu0.b32.cont [6/16] %v330, 128
        %667 = vxpose.xlu0.b32.cont [7/16] %v331, 128
        %668 = vxpose.xlu0.b32.cont [8/16] %v332, 128
        %669 = vxpose.xlu0.b32.cont [9/16] %v333, 128
        %670 = vxpose.xlu0.b32.cont [10/16] %v334, 128
        %671 = vxpose.xlu0.b32.cont [11/16] %v335, 128
        %672 = vxpose.xlu0.b32.cont [12/16] %v336, 128
        %673 = vxpose.xlu0.b32.cont [13/16] %v337, 128
        %674 = vxpose.xlu0.b32.cont [14/16] %v338, 128
        %675 = vxpose.xlu0.b32.cont [15/16] %v339, 128
        %676 = vxpose.xlu0.b32.end [16/16] %v340, 128
        %v677 = vpop.trf.xlu0
        %v678 = vpop.trf.xlu0
        %v679 = vpop.trf.xlu0
        %v680 = vpop.trf.xlu0
        %v681 = vpop.trf.xlu0
        %v682 = vpop.trf.xlu0
        %v683 = vpop.trf.xlu0
        %v684 = vpop.trf.xlu0
        %v685 = vpop.trf.xlu0
        %v686 = vpop.trf.xlu0
        %v687 = vpop.trf.xlu0
        %v688 = vpop.trf.xlu0
        %v689 = vpop.trf.xlu0
        %v690 = vpop.trf.xlu0
        %v691 = vpop.trf.xlu0
        %v692 = vpop.trf.xlu0
        %693 = vxpose.xlu0.b32.start [1/16] %v341, 128
        %694 = vxpose.xlu0.b32.cont [2/16] %v342, 128
        %695 = vxpose.xlu0.b32.cont [3/16] %v343, 128
        %696 = vxpose.xlu0.b32.cont [4/16] %v344, 128
        %697 = vxpose.xlu0.b32.cont [5/16] %v345, 128
        %698 = vxpose.xlu0.b32.cont [6/16] %v346, 128
        %699 = vxpose.xlu0.b32.cont [7/16] %v347, 128
        %700 = vxpose.xlu0.b32.cont [8/16] %v348, 128
        %701 = vxpose.xlu0.b32.cont [9/16] %v349, 128
        %702 = vxpose.xlu0.b32.cont [10/16] %v350, 128
        %703 = vxpose.xlu0.b32.cont [11/16] %v351, 128
        %704 = vxpose.xlu0.b32.cont [12/16] %v352, 128
        %705 = vxpose.xlu0.b32.cont [13/16] %v353, 128
        %706 = vxpose.xlu0.b32.cont [14/16] %v354, 128
        %707 = vxpose.xlu0.b32.cont [15/16] %v355, 128
        %708 = vxpose.xlu0.b32.end [16/16] %v356, 128
        %v709 = vpop.trf.xlu0
        %v710 = vpop.trf.xlu0
        %v711 = vpop.trf.xlu0
        %v712 = vpop.trf.xlu0
        %v713 = vpop.trf.xlu0
        %v714 = vpop.trf.xlu0
        %v715 = vpop.trf.xlu0
        %v716 = vpop.trf.xlu0
        %v717 = vpop.trf.xlu0
        %v718 = vpop.trf.xlu0
        %v719 = vpop.trf.xlu0
        %v720 = vpop.trf.xlu0
        %v721 = vpop.trf.xlu0
        %v722 = vpop.trf.xlu0
        %v723 = vpop.trf.xlu0
        %v724 = vpop.trf.xlu0
        %725 = vxpose.xlu0.b32.start [1/16] %v357, 128
        %726 = vxpose.xlu0.b32.cont [2/16] %v358, 128
        %727 = vxpose.xlu0.b32.cont [3/16] %v359, 128
        %728 = vxpose.xlu0.b32.cont [4/16] %v360, 128
        %729 = vxpose.xlu0.b32.cont [5/16] %v361, 128
        %730 = vxpose.xlu0.b32.cont [6/16] %v362, 128
        %731 = vxpose.xlu0.b32.cont [7/16] %v363, 128
        %732 = vxpose.xlu0.b32.cont [8/16] %v364, 128
        %733 = vxpose.xlu0.b32.cont [9/16] %v365, 128
        %734 = vxpose.xlu0.b32.cont [10/16] %v366, 128
        %735 = vxpose.xlu0.b32.cont [11/16] %v367, 128
        %736 = vxpose.xlu0.b32.cont [12/16] %v368, 128
        %737 = vxpose.xlu0.b32.cont [13/16] %v369, 128
        %738 = vxpose.xlu0.b32.cont [14/16] %v370, 128
        %739 = vxpose.xlu0.b32.cont [15/16] %v371, 128
        %740 = vxpose.xlu0.b32.end [16/16] %v372, 128
        %v741 = vpop.trf.xlu0
        %v742 = vpop.trf.xlu0
        %v743 = vpop.trf.xlu0
        %v744 = vpop.trf.xlu0
        %v745 = vpop.trf.xlu0
        %v746 = vpop.trf.xlu0
        %v747 = vpop.trf.xlu0
        %v748 = vpop.trf.xlu0
        %v749 = vpop.trf.xlu0
        %v750 = vpop.trf.xlu0
        %v751 = vpop.trf.xlu0
        %v752 = vpop.trf.xlu0
        %v753 = vpop.trf.xlu0
        %v754 = vpop.trf.xlu0
        %v755 = vpop.trf.xlu0
        %v756 = vpop.trf.xlu0
        %757 = vxpose.xlu0.b32.start [1/16] %v373, 128
        %758 = vxpose.xlu0.b32.cont [2/16] %v374, 128
        %759 = vxpose.xlu0.b32.cont [3/16] %v375, 128
        %760 = vxpose.xlu0.b32.cont [4/16] %v376, 128
        %761 = vxpose.xlu0.b32.cont [5/16] %v377, 128
        %762 = vxpose.xlu0.b32.cont [6/16] %v378, 128
        %763 = vxpose.xlu0.b32.cont [7/16] %v379, 128
        %764 = vxpose.xlu0.b32.cont [8/16] %v380, 128
        %765 = vxpose.xlu0.b32.cont [9/16] %v381, 128
        %766 = vxpose.xlu0.b32.cont [10/16] %v382, 128
        %767 = vxpose.xlu0.b32.cont [11/16] %v383, 128
        %768 = vxpose.xlu0.b32.cont [12/16] %v384, 128
        %769 = vxpose.xlu0.b32.cont [13/16] %v385, 128
        %770 = vxpose.xlu0.b32.cont [14/16] %v386, 128
        %771 = vxpose.xlu0.b32.cont [15/16] %v387, 128
        %772 = vxpose.xlu0.b32.end [16/16] %v388, 128
        %v773 = vpop.trf.xlu0
        %v774 = vpop.trf.xlu0
        %v775 = vpop.trf.xlu0
        %v776 = vpop.trf.xlu0
        %v777 = vpop.trf.xlu0
        %v778 = vpop.trf.xlu0
        %v779 = vpop.trf.xlu0
        %v780 = vpop.trf.xlu0
        %v781 = vpop.trf.xlu0
        %v782 = vpop.trf.xlu0
        %v783 = vpop.trf.xlu0
        %v784 = vpop.trf.xlu0
        %v785 = vpop.trf.xlu0
        %v786 = vpop.trf.xlu0
        %v787 = vpop.trf.xlu0
        %v788 = vpop.trf.xlu0
        %789 = vxpose.xlu0.b32.start [1/16] %v389, 128
        %790 = vxpose.xlu0.b32.cont [2/16] %v390, 128
        %791 = vxpose.xlu0.b32.cont [3/16] %v391, 128
        %792 = vxpose.xlu0.b32.cont [4/16] %v392, 128
        %793 = vxpose.xlu0.b32.cont [5/16] %v393, 128
        %794 = vxpose.xlu0.b32.cont [6/16] %v394, 128
        %795 = vxpose.xlu0.b32.cont [7/16] %v395, 128
        %796 = vxpose.xlu0.b32.cont [8/16] %v396, 128
        %797 = vxpose.xlu0.b32.cont [9/16] %v397, 128
        %798 = vxpose.xlu0.b32.cont [10/16] %v398, 128
        %799 = vxpose.xlu0.b32.cont [11/16] %v399, 128
        %800 = vxpose.xlu0.b32.cont [12/16] %v400, 128
        %801 = vxpose.xlu0.b32.cont [13/16] %v401, 128
        %802 = vxpose.xlu0.b32.cont [14/16] %v402, 128
        %803 = vxpose.xlu0.b32.cont [15/16] %v403, 128
        %804 = vxpose.xlu0.b32.end [16/16] %v404, 128
        %v805 = vpop.trf.xlu0
        %v806 = vpop.trf.xlu0
        %v807 = vpop.trf.xlu0
        %v808 = vpop.trf.xlu0
        %v809 = vpop.trf.xlu0
        %v810 = vpop.trf.xlu0
        %v811 = vpop.trf.xlu0
        %v812 = vpop.trf.xlu0
        %v813 = vpop.trf.xlu0
        %v814 = vpop.trf.xlu0
        %v815 = vpop.trf.xlu0
        %v816 = vpop.trf.xlu0
        %v817 = vpop.trf.xlu0
        %v818 = vpop.trf.xlu0
        %v819 = vpop.trf.xlu0
        %v820 = vpop.trf.xlu0
        %821 = vxpose.xlu0.b32.start [1/16] %v405, 128
        %822 = vxpose.xlu0.b32.cont [2/16] %v406, 128
        %823 = vxpose.xlu0.b32.cont [3/16] %v407, 128
        %824 = vxpose.xlu0.b32.cont [4/16] %v408, 128
        %825 = vxpose.xlu0.b32.cont [5/16] %v409, 128
        %826 = vxpose.xlu0.b32.cont [6/16] %v410, 128
        %827 = vxpose.xlu0.b32.cont [7/16] %v411, 128
        %828 = vxpose.xlu0.b32.cont [8/16] %v412, 128
        %829 = vxpose.xlu0.b32.cont [9/16] %v413, 128
        %830 = vxpose.xlu0.b32.cont [10/16] %v414, 128
        %831 = vxpose.xlu0.b32.cont [11/16] %v415, 128
        %832 = vxpose.xlu0.b32.cont [12/16] %v416, 128
        %833 = vxpose.xlu0.b32.cont [13/16] %v417, 128
        %834 = vxpose.xlu0.b32.cont [14/16] %v418, 128
        %835 = vxpose.xlu0.b32.cont [15/16] %v419, 128
        %836 = vxpose.xlu0.b32.end [16/16] %v420, 128
        %v837 = vpop.trf.xlu0
        %v838 = vpop.trf.xlu0
        %v839 = vpop.trf.xlu0
        %v840 = vpop.trf.xlu0
        %v841 = vpop.trf.xlu0
        %v842 = vpop.trf.xlu0
        %v843 = vpop.trf.xlu0
        %v844 = vpop.trf.xlu0
        %v845 = vpop.trf.xlu0
        %v846 = vpop.trf.xlu0
        %v847 = vpop.trf.xlu0
        %v848 = vpop.trf.xlu0
        %v849 = vpop.trf.xlu0
        %v850 = vpop.trf.xlu0
        %v851 = vpop.trf.xlu0
        %v852 = vpop.trf.xlu0
        %853 = vxpose.xlu0.b32.start [1/16] %v421, 128
        %854 = vxpose.xlu0.b32.cont [2/16] %v422, 128
        %855 = vxpose.xlu0.b32.cont [3/16] %v423, 128
        %856 = vxpose.xlu0.b32.cont [4/16] %v424, 128
        %857 = vxpose.xlu0.b32.cont [5/16] %v425, 128
        %858 = vxpose.xlu0.b32.cont [6/16] %v426, 128
        %859 = vxpose.xlu0.b32.cont [7/16] %v427, 128
        %860 = vxpose.xlu0.b32.cont [8/16] %v428, 128
        %861 = vxpose.xlu0.b32.cont [9/16] %v429, 128
        %862 = vxpose.xlu0.b32.cont [10/16] %v430, 128
        %863 = vxpose.xlu0.b32.cont [11/16] %v431, 128
        %864 = vxpose.xlu0.b32.cont [12/16] %v432, 128
        %865 = vxpose.xlu0.b32.cont [13/16] %v433, 128
        %866 = vxpose.xlu0.b32.cont [14/16] %v434, 128
        %867 = vxpose.xlu0.b32.cont [15/16] %v435, 128
        %868 = vxpose.xlu0.b32.end [16/16] %v436, 128
        %v869 = vpop.trf.xlu0
        %v870 = vpop.trf.xlu0
        %v871 = vpop.trf.xlu0
        %v872 = vpop.trf.xlu0
        %v873 = vpop.trf.xlu0
        %v874 = vpop.trf.xlu0
        %v875 = vpop.trf.xlu0
        %v876 = vpop.trf.xlu0
        %v877 = vpop.trf.xlu0
        %v878 = vpop.trf.xlu0
        %v879 = vpop.trf.xlu0
        %v880 = vpop.trf.xlu0
        %v881 = vpop.trf.xlu0
        %v882 = vpop.trf.xlu0
        %v883 = vpop.trf.xlu0
        %v884 = vpop.trf.xlu0
        %885 = vxpose.xlu0.b32.start [1/16] %v437, 128
        %886 = vxpose.xlu0.b32.cont [2/16] %v438, 128
        %887 = vxpose.xlu0.b32.cont [3/16] %v439, 128
        %888 = vxpose.xlu0.b32.cont [4/16] %v440, 128
        %889 = vxpose.xlu0.b32.cont [5/16] %v441, 128
        %890 = vxpose.xlu0.b32.cont [6/16] %v442, 128
        %891 = vxpose.xlu0.b32.cont [7/16] %v443, 128
        %892 = vxpose.xlu0.b32.cont [8/16] %v444, 128
        %893 = vxpose.xlu0.b32.cont [9/16] %v445, 128
        %894 = vxpose.xlu0.b32.cont [10/16] %v446, 128
        %895 = vxpose.xlu0.b32.cont [11/16] %v447, 128
        %896 = vxpose.xlu0.b32.cont [12/16] %v448, 128
        %897 = vxpose.xlu0.b32.cont [13/16] %v449, 128
        %898 = vxpose.xlu0.b32.cont [14/16] %v450, 128
        %899 = vxpose.xlu0.b32.cont [15/16] %v451, 128
        %900 = vxpose.xlu0.b32.end [16/16] %v452, 128
        %v901 = vpop.trf.xlu0
        %v902 = vpop.trf.xlu0
        %v903 = vpop.trf.xlu0
        %v904 = vpop.trf.xlu0
        %v905 = vpop.trf.xlu0
        %v906 = vpop.trf.xlu0
        %v907 = vpop.trf.xlu0
        %v908 = vpop.trf.xlu0
        %v909 = vpop.trf.xlu0
        %v910 = vpop.trf.xlu0
        %v911 = vpop.trf.xlu0
        %v912 = vpop.trf.xlu0
        %v913 = vpop.trf.xlu0
        %v914 = vpop.trf.xlu0
        %v915 = vpop.trf.xlu0
        %v916 = vpop.trf.xlu0
        %917 = vxpose.xlu0.b32.start [1/16] %v453, 128
        %918 = vxpose.xlu0.b32.cont [2/16] %v454, 128
        %919 = vxpose.xlu0.b32.cont [3/16] %v455, 128
        %920 = vxpose.xlu0.b32.cont [4/16] %v456, 128
        %921 = vxpose.xlu0.b32.cont [5/16] %v457, 128
        %922 = vxpose.xlu0.b32.cont [6/16] %v458, 128
        %923 = vxpose.xlu0.b32.cont [7/16] %v459, 128
        %924 = vxpose.xlu0.b32.cont [8/16] %v460, 128
        %925 = vxpose.xlu0.b32.cont [9/16] %v461, 128
        %926 = vxpose.xlu0.b32.cont [10/16] %v462, 128
        %927 = vxpose.xlu0.b32.cont [11/16] %v463, 128
        %928 = vxpose.xlu0.b32.cont [12/16] %v464, 128
        %929 = vxpose.xlu0.b32.cont [13/16] %v465, 128
        %930 = vxpose.xlu0.b32.cont [14/16] %v466, 128
        %931 = vxpose.xlu0.b32.cont [15/16] %v467, 128
        %932 = vxpose.xlu0.b32.end [16/16] %v468, 128
        %v933 = vpop.trf.xlu0
        %v934 = vpop.trf.xlu0
        %v935 = vpop.trf.xlu0
        %v936 = vpop.trf.xlu0
        %v937 = vpop.trf.xlu0
        %v938 = vpop.trf.xlu0
        %v939 = vpop.trf.xlu0
        %v940 = vpop.trf.xlu0
        %v941 = vpop.trf.xlu0
        %v942 = vpop.trf.xlu0
        %v943 = vpop.trf.xlu0
        %v944 = vpop.trf.xlu0
        %v945 = vpop.trf.xlu0
        %v946 = vpop.trf.xlu0
        %v947 = vpop.trf.xlu0
        %v948 = vpop.trf.xlu0
        %949 = vxpose.xlu0.b32.start [1/16] %v469, 128
        %950 = vxpose.xlu0.b32.cont [2/16] %v470, 128
        %951 = vxpose.xlu0.b32.cont [3/16] %v471, 128
        %952 = vxpose.xlu0.b32.cont [4/16] %v472, 128
        %953 = vxpose.xlu0.b32.cont [5/16] %v473, 128
        %954 = vxpose.xlu0.b32.cont [6/16] %v474, 128
        %955 = vxpose.xlu0.b32.cont [7/16] %v475, 128
        %956 = vxpose.xlu0.b32.cont [8/16] %v476, 128
        %957 = vxpose.xlu0.b32.cont [9/16] %v477, 128
        %958 = vxpose.xlu0.b32.cont [10/16] %v478, 128
        %959 = vxpose.xlu0.b32.cont [11/16] %v479, 128
        %960 = vxpose.xlu0.b32.cont [12/16] %v480, 128
        %961 = vxpose.xlu0.b32.cont [13/16] %v481, 128
        %962 = vxpose.xlu0.b32.cont [14/16] %v482, 128
        %963 = vxpose.xlu0.b32.cont [15/16] %v483, 128
        %964 = vxpose.xlu0.b32.end [16/16] %v484, 128
        %v965 = vpop.trf.xlu0
        %v966 = vpop.trf.xlu0
        %v967 = vpop.trf.xlu0
        %v968 = vpop.trf.xlu0
        %v969 = vpop.trf.xlu0
        %v970 = vpop.trf.xlu0
        %v971 = vpop.trf.xlu0
        %v972 = vpop.trf.xlu0
        %v973 = vpop.trf.xlu0
        %v974 = vpop.trf.xlu0
        %v975 = vpop.trf.xlu0
        %v976 = vpop.trf.xlu0
        %v977 = vpop.trf.xlu0
        %v978 = vpop.trf.xlu0
        %v979 = vpop.trf.xlu0
        %v980 = vpop.trf.xlu0
        %981 = vxpose.xlu0.b32.start [1/16] %v485, 128
        %982 = vxpose.xlu0.b32.cont [2/16] %v486, 128
        %983 = vxpose.xlu0.b32.cont [3/16] %v487, 128
        %984 = vxpose.xlu0.b32.cont [4/16] %v488, 128
        %985 = vxpose.xlu0.b32.cont [5/16] %v489, 128
        %986 = vxpose.xlu0.b32.cont [6/16] %v490, 128
        %987 = vxpose.xlu0.b32.cont [7/16] %v491, 128
        %988 = vxpose.xlu0.b32.cont [8/16] %v492, 128
        %989 = vxpose.xlu0.b32.cont [9/16] %v493, 128
        %990 = vxpose.xlu0.b32.cont [10/16] %v494, 128
        %991 = vxpose.xlu0.b32.cont [11/16] %v495, 128
        %992 = vxpose.xlu0.b32.cont [12/16] %v496, 128
        %993 = vxpose.xlu0.b32.cont [13/16] %v497, 128
        %994 = vxpose.xlu0.b32.cont [14/16] %v498, 128
        %995 = vxpose.xlu0.b32.cont [15/16] %v499, 128
        %996 = vxpose.xlu0.b32.end [16/16] %v500, 128
        %v997 = vpop.trf.xlu0
        %v998 = vpop.trf.xlu0
        %v999 = vpop.trf.xlu0
        %v1000 = vpop.trf.xlu0
        %v1001 = vpop.trf.xlu0
        %v1002 = vpop.trf.xlu0
        %v1003 = vpop.trf.xlu0
        %v1004 = vpop.trf.xlu0
        %v1005 = vpop.trf.xlu0
        %v1006 = vpop.trf.xlu0
        %v1007 = vpop.trf.xlu0
        %v1008 = vpop.trf.xlu0
        %v1009 = vpop.trf.xlu0
        %v1010 = vpop.trf.xlu0
        %v1011 = vpop.trf.xlu0
        %v1012 = vpop.trf.xlu0
        %v1013 = vld [vmem:[%s2] sm:$0xff]
        %v1014 = vld [vmem:[%s2 + $0x8] sm:$0xff]
        %v1015 = vld [vmem:[%s2 + $0x10] sm:$0xff]
        %v1016 = vld [vmem:[%s2 + $0x18] sm:$0xff]
        %v1017 = vld [vmem:[%s2 + $0x20] sm:$0xff]
        %v1018 = vld [vmem:[%s2 + $0x28] sm:$0xff]
        %v1019 = vld [vmem:[%s2 + $0x30] sm:$0xff]
        %v1020 = vld [vmem:[%s2 + $0x38] sm:$0xff]
        %v1021 = vld [vmem:[%s2 + $0x40] sm:$0xff]
        %v1022 = vld [vmem:[%s2 + $0x48] sm:$0xff]
        %v1023 = vld [vmem:[%s2 + $0x50] sm:$0xff]
        %v1024 = vld [vmem:[%s2 + $0x58] sm:$0xff]
        %v1025 = vld [vmem:[%s2 + $0x60] sm:$0xff]
        %v1026 = vld [vmem:[%s2 + $0x68] sm:$0xff]
        %v1027 = vld [vmem:[%s2 + $0x70] sm:$0xff]
        %v1028 = vld [vmem:[%s2 + $0x78] sm:$0xff]
        %v1029 = vld [vmem:[%s2 + $0x80] sm:$0xff]
        %v1030 = vld [vmem:[%s2 + $0x88] sm:$0xff]
        %v1031 = vld [vmem:[%s2 + $0x90] sm:$0xff]
        %v1032 = vld [vmem:[%s2 + $0x98] sm:$0xff]
        %v1033 = vld [vmem:[%s2 + $0xa0] sm:$0xff]
        %v1034 = vld [vmem:[%s2 + $0xa8] sm:$0xff]
        %v1035 = vld [vmem:[%s2 + $0xb0] sm:$0xff]
        %v1036 = vld [vmem:[%s2 + $0xb8] sm:$0xff]
        %v1037 = vld [vmem:[%s2 + $0xc0] sm:$0xff]
        %v1038 = vld [vmem:[%s2 + $0xc8] sm:$0xff]
        %v1039 = vld [vmem:[%s2 + $0xd0] sm:$0xff]
        %v1040 = vld [vmem:[%s2 + $0xd8] sm:$0xff]
        %v1041 = vld [vmem:[%s2 + $0xe0] sm:$0xff]
        %v1042 = vld [vmem:[%s2 + $0xe8] sm:$0xff]
        %v1043 = vld [vmem:[%s2 + $0xf0] sm:$0xff]
        %v1044 = vld [vmem:[%s2 + $0xf8] sm:$0xff]
        %1045 = vmatprep.subr.mxu0 0.0
        %1046 = vmatpush1.msra.mxu0 %v1028
        %1047 = vmatprep.subr.mxu0 0.0
        %1048 = vmatpush1.msra.mxu0 %v1027
        %1049 = vmatprep.subr.mxu0 0.0
        %1050 = vmatpush1.msra.mxu0 %v1026
        %1051 = vmatprep.subr.mxu0 0.0
        %1052 = vmatpush1.msra.mxu0 %v1025
        %1053 = vmatprep.subr.mxu0 0.0
        %1054 = vmatpush1.msra.mxu0 %v1024
        %1055 = vmatprep.subr.mxu0 0.0
        %1056 = vmatpush1.msra.mxu0 %v1023
        %1057 = vmatprep.subr.mxu0 0.0
        %1058 = vmatpush1.msra.mxu0 %v1022
        %1059 = vmatprep.subr.mxu0 0.0
        %1060 = vmatpush1.msra.mxu0 %v1021
        %1061 = vmatprep.subr.mxu0 0.0
        %1062 = vmatpush1.msra.mxu0 %v1020
        %1063 = vmatprep.subr.mxu0 0.0
        %1064 = vmatpush1.msra.mxu0 %v1019
        %1065 = vmatprep.subr.mxu0 0.0
        %1066 = vmatpush1.msra.mxu0 %v1018
        %1067 = vmatprep.subr.mxu0 0.0
        %1068 = vmatpush1.msra.mxu0 %v1017
        %1069 = vmatprep.subr.mxu0 0.0
        %1070 = vmatpush1.msra.mxu0 %v1016
        %1071 = vmatprep.subr.mxu0 0.0
        %1072 = vmatpush1.msra.mxu0 %v1015
        %1073 = vmatprep.subr.mxu0 0.0
        %1074 = vmatpush1.msra.mxu0 %v1014
        %1075 = vmatprep.subr.mxu0 0.0
        %1076 = vmatpush1.msra.mxu0 %v1013
        %1077 = vmatprep.subr.mxu0 0.0
        %1078 = vmatpush2.msra.mxu0 %v1044
        %1079 = vmatprep.subr.mxu0 0.0
        %1080 = vmatpush2.msra.mxu0 %v1043
        %1081 = vmatprep.subr.mxu0 0.0
        %1082 = vmatpush2.msra.mxu0 %v1042
        %1083 = vmatprep.subr.mxu0 0.0
        %1084 = vmatpush2.msra.mxu0 %v1041
        %1085 = vmatprep.subr.mxu0 0.0
        %1086 = vmatpush2.msra.mxu0 %v1040
        %1087 = vmatprep.subr.mxu0 0.0
        %1088 = vmatpush2.msra.mxu0 %v1039
        %1089 = vmatprep.subr.mxu0 0.0
        %1090 = vmatpush2.msra.mxu0 %v1038
        %1091 = vmatprep.subr.mxu0 0.0
        %1092 = vmatpush2.msra.mxu0 %v1037
        %1093 = vmatprep.subr.mxu0 0.0
        %1094 = vmatpush2.msra.mxu0 %v1036
        %1095 = vmatprep.subr.mxu0 0.0
        %1096 = vmatpush2.msra.mxu0 %v1035
        %1097 = vmatprep.subr.mxu0 0.0
        %1098 = vmatpush2.msra.mxu0 %v1034
        %1099 = vmatprep.subr.mxu0 0.0
        %1100 = vmatpush2.msra.mxu0 %v1033
        %1101 = vmatprep.subr.mxu0 0.0
        %1102 = vmatpush2.msra.mxu0 %v1032
        %1103 = vmatprep.subr.mxu0 0.0
        %1104 = vmatpush2.msra.mxu0 %v1031
        %1105 = vmatprep.subr.mxu0 0.0
        %1106 = vmatpush2.msra.mxu0 %v1030
        %1107 = vmatprep.subr.mxu0 0.0
        %1108 = vmatpush2.msra.mxu0 %v1029
        %1109 = vmatprep.mubr.f32.mxu0 %v549
        %1110 = vmatmul.mubr.f32.gmra.mxu0 %v517
        %v1111 = vpop.f32.mrf.mxu0
        %v1112 = vadd.f32 0.0, %v1111
        %v1113 = vpop.f32.mrf.mxu0
        %1114 = vmatprep.mubr.f32.mxu0 %v550
        %1115 = vmatmul.mubr.f32.gmra.mxu0 %v518
        %v1116 = vpop.f32.mrf.mxu0
        %v1117 = vadd.f32 0.0, %v1116
        %v1118 = vpop.f32.mrf.mxu0
        %1119 = vmatprep.mubr.f32.mxu0 %v551
        %1120 = vmatmul.mubr.f32.gmra.mxu0 %v519
        %v1121 = vpop.f32.mrf.mxu0
        %v1122 = vadd.f32 0.0, %v1121
        %v1123 = vpop.f32.mrf.mxu0
        %1124 = vmatprep.mubr.f32.mxu0 %v552
        %1125 = vmatmul.mubr.f32.gmra.mxu0 %v520
        %v1126 = vpop.f32.mrf.mxu0
        %v1127 = vadd.f32 0.0, %v1126
        %v1128 = vpop.f32.mrf.mxu0
        %1129 = vmatprep.mubr.f32.mxu0 %v553
        %1130 = vmatmul.mubr.f32.gmra.mxu0 %v521
        %v1131 = vpop.f32.mrf.mxu0
        %v1132 = vadd.f32 0.0, %v1131
        %v1133 = vpop.f32.mrf.mxu0
        %1134 = vmatprep.mubr.f32.mxu0 %v554
        %1135 = vmatmul.mubr.f32.gmra.mxu0 %v522
        %v1136 = vpop.f32.mrf.mxu0
        %v1137 = vadd.f32 0.0, %v1136
        %v1138 = vpop.f32.mrf.mxu0
        %1139 = vmatprep.mubr.f32.mxu0 %v555
        %1140 = vmatmul.mubr.f32.gmra.mxu0 %v523
        %v1141 = vpop.f32.mrf.mxu0
        %v1142 = vadd.f32 0.0, %v1141
        %v1143 = vpop.f32.mrf.mxu0
        %1144 = vmatprep.mubr.f32.mxu0 %v556
        %1145 = vmatmul.mubr.f32.gmra.mxu0 %v524
        %v1146 = vpop.f32.mrf.mxu0
        %v1147 = vadd.f32 0.0, %v1146
        %v1148 = vpop.f32.mrf.mxu0
        %1149 = vmatprep.mubr.f32.mxu0 %v613
        %1150 = vmatmul.mubr.f32.gmra.mxu0 %v581
        %v1151 = vpop.f32.mrf.mxu0
        %v1152 = vadd.f32 0.0, %v1151
        %v1153 = vpop.f32.mrf.mxu0
        %1154 = vmatprep.mubr.f32.mxu0 %v614
        %1155 = vmatmul.mubr.f32.gmra.mxu0 %v582
        %v1156 = vpop.f32.mrf.mxu0
        %v1157 = vadd.f32 0.0, %v1156
        %v1158 = vpop.f32.mrf.mxu0
        %1159 = vmatprep.mubr.f32.mxu0 %v615
        %1160 = vmatmul.mubr.f32.gmra.mxu0 %v583
        %v1161 = vpop.f32.mrf.mxu0
        %v1162 = vadd.f32 0.0, %v1161
        %v1163 = vpop.f32.mrf.mxu0
        %1164 = vmatprep.mubr.f32.mxu0 %v616
        %1165 = vmatmul.mubr.f32.gmra.mxu0 %v584
        %v1166 = vpop.f32.mrf.mxu0
        %v1167 = vadd.f32 0.0, %v1166
        %v1168 = vpop.f32.mrf.mxu0
        %1169 = vmatprep.mubr.f32.mxu0 %v617
        %1170 = vmatmul.mubr.f32.gmra.mxu0 %v585
        %v1171 = vpop.f32.mrf.mxu0
        %v1172 = vadd.f32 0.0, %v1171
        %v1173 = vpop.f32.mrf.mxu0
        %1174 = vmatprep.mubr.f32.mxu0 %v618
        %1175 = vmatmul.mubr.f32.gmra.mxu0 %v586
        %v1176 = vpop.f32.mrf.mxu0
        %v1177 = vadd.f32 0.0, %v1176
        %v1178 = vpop.f32.mrf.mxu0
        %1179 = vmatprep.mubr.f32.mxu0 %v619
        %1180 = vmatmul.mubr.f32.gmra.mxu0 %v587
        %v1181 = vpop.f32.mrf.mxu0
        %v1182 = vadd.f32 0.0, %v1181
        %v1183 = vpop.f32.mrf.mxu0
        %1184 = vmatprep.mubr.f32.mxu0 %v620
        %1185 = vmatmul.mubr.f32.gmra.mxu0 %v588
        %v1186 = vpop.f32.mrf.mxu0
        %v1187 = vadd.f32 0.0, %v1186
        %v1188 = vpop.f32.mrf.mxu0
        %1189 = vmatprep.mubr.f32.mxu0 %v677
        %1190 = vmatmul.mubr.f32.gmra.mxu0 %v645
        %v1191 = vpop.f32.mrf.mxu0
        %v1192 = vadd.f32 0.0, %v1191
        %v1193 = vpop.f32.mrf.mxu0
        %1194 = vmatprep.mubr.f32.mxu0 %v678
        %1195 = vmatmul.mubr.f32.gmra.mxu0 %v646
        %v1196 = vpop.f32.mrf.mxu0
        %v1197 = vadd.f32 0.0, %v1196
        %v1198 = vpop.f32.mrf.mxu0
        %1199 = vmatprep.mubr.f32.mxu0 %v679
        %1200 = vmatmul.mubr.f32.gmra.mxu0 %v647
        %v1201 = vpop.f32.mrf.mxu0
        %v1202 = vadd.f32 0.0, %v1201
        %v1203 = vpop.f32.mrf.mxu0
        %1204 = vmatprep.mubr.f32.mxu0 %v680
        %1205 = vmatmul.mubr.f32.gmra.mxu0 %v648
        %v1206 = vpop.f32.mrf.mxu0
        %v1207 = vadd.f32 0.0, %v1206
        %v1208 = vpop.f32.mrf.mxu0
        %1209 = vmatprep.mubr.f32.mxu0 %v681
        %1210 = vmatmul.mubr.f32.gmra.mxu0 %v649
        %v1211 = vpop.f32.mrf.mxu0
        %v1212 = vadd.f32 0.0, %v1211
        %v1213 = vpop.f32.mrf.mxu0
        %1214 = vmatprep.mubr.f32.mxu0 %v682
        %1215 = vmatmul.mubr.f32.gmra.mxu0 %v650
        %v1216 = vpop.f32.mrf.mxu0
        %v1217 = vadd.f32 0.0, %v1216
        %v1218 = vpop.f32.mrf.mxu0
        %1219 = vmatprep.mubr.f32.mxu0 %v683
        %1220 = vmatmul.mubr.f32.gmra.mxu0 %v651
        %v1221 = vpop.f32.mrf.mxu0
        %v1222 = vadd.f32 0.0, %v1221
        %v1223 = vpop.f32.mrf.mxu0
        %1224 = vmatprep.mubr.f32.mxu0 %v684
        %1225 = vmatmul.mubr.f32.gmra.mxu0 %v652
        %v1226 = vpop.f32.mrf.mxu0
        %v1227 = vadd.f32 0.0, %v1226
        %v1228 = vpop.f32.mrf.mxu0
        %1229 = vmatprep.mubr.f32.mxu0 %v741
        %1230 = vmatmul.mubr.f32.gmra.mxu0 %v709
        %v1231 = vpop.f32.mrf.mxu0
        %v1232 = vadd.f32 0.0, %v1231
        %v1233 = vpop.f32.mrf.mxu0
        %1234 = vmatprep.mubr.f32.mxu0 %v742
        %1235 = vmatmul.mubr.f32.gmra.mxu0 %v710
        %v1236 = vpop.f32.mrf.mxu0
        %v1237 = vadd.f32 0.0, %v1236
        %v1238 = vpop.f32.mrf.mxu0
        %1239 = vmatprep.mubr.f32.mxu0 %v743
        %1240 = vmatmul.mubr.f32.gmra.mxu0 %v711
        %v1241 = vpop.f32.mrf.mxu0
        %v1242 = vadd.f32 0.0, %v1241
        %v1243 = vpop.f32.mrf.mxu0
        %1244 = vmatprep.mubr.f32.mxu0 %v744
        %1245 = vmatmul.mubr.f32.gmra.mxu0 %v712
        %v1246 = vpop.f32.mrf.mxu0
        %v1247 = vadd.f32 0.0, %v1246
        %v1248 = vpop.f32.mrf.mxu0
        %1249 = vmatprep.mubr.f32.mxu0 %v745
        %1250 = vmatmul.mubr.f32.gmra.mxu0 %v713
        %v1251 = vpop.f32.mrf.mxu0
        %v1252 = vadd.f32 0.0, %v1251
        %v1253 = vpop.f32.mrf.mxu0
        %1254 = vmatprep.mubr.f32.mxu0 %v746
        %1255 = vmatmul.mubr.f32.gmra.mxu0 %v714
        %v1256 = vpop.f32.mrf.mxu0
        %v1257 = vadd.f32 0.0, %v1256
        %v1258 = vpop.f32.mrf.mxu0
        %1259 = vmatprep.mubr.f32.mxu0 %v747
        %1260 = vmatmul.mubr.f32.gmra.mxu0 %v715
        %v1261 = vpop.f32.mrf.mxu0
        %v1262 = vadd.f32 0.0, %v1261
        %v1263 = vpop.f32.mrf.mxu0
        %1264 = vmatprep.mubr.f32.mxu0 %v748
        %1265 = vmatmul.mubr.f32.gmra.mxu0 %v716
        %v1266 = vpop.f32.mrf.mxu0
        %v1267 = vadd.f32 0.0, %v1266
        %v1268 = vpop.f32.mrf.mxu0
        %1269 = vmatprep.mubr.f32.mxu0 %v805
        %1270 = vmatmul.mubr.f32.gmra.mxu0 %v773
        %v1271 = vpop.f32.mrf.mxu0
        %v1272 = vadd.f32 0.0, %v1271
        %v1273 = vpop.f32.mrf.mxu0
        %1274 = vmatprep.mubr.f32.mxu0 %v806
        %1275 = vmatmul.mubr.f32.gmra.mxu0 %v774
        %v1276 = vpop.f32.mrf.mxu0
        %v1277 = vadd.f32 0.0, %v1276
        %v1278 = vpop.f32.mrf.mxu0
        %1279 = vmatprep.mubr.f32.mxu0 %v807
        %1280 = vmatmul.mubr.f32.gmra.mxu0 %v775
        %v1281 = vpop.f32.mrf.mxu0
        %v1282 = vadd.f32 0.0, %v1281
        %v1283 = vpop.f32.mrf.mxu0
        %1284 = vmatprep.mubr.f32.mxu0 %v808
        %1285 = vmatmul.mubr.f32.gmra.mxu0 %v776
        %v1286 = vpop.f32.mrf.mxu0
        %v1287 = vadd.f32 0.0, %v1286
        %v1288 = vpop.f32.mrf.mxu0
        %1289 = vmatprep.mubr.f32.mxu0 %v809
        %1290 = vmatmul.mubr.f32.gmra.mxu0 %v777
        %v1291 = vpop.f32.mrf.mxu0
        %v1292 = vadd.f32 0.0, %v1291
        %v1293 = vpop.f32.mrf.mxu0
        %1294 = vmatprep.mubr.f32.mxu0 %v810
        %1295 = vmatmul.mubr.f32.gmra.mxu0 %v778
        %v1296 = vpop.f32.mrf.mxu0
        %v1297 = vadd.f32 0.0, %v1296
        %v1298 = vpop.f32.mrf.mxu0
        %1299 = vmatprep.mubr.f32.mxu0 %v811
        %1300 = vmatmul.mubr.f32.gmra.mxu0 %v779
        %v1301 = vpop.f32.mrf.mxu0
        %v1302 = vadd.f32 0.0, %v1301
        %v1303 = vpop.f32.mrf.mxu0
        %1304 = vmatprep.mubr.f32.mxu0 %v812
        %1305 = vmatmul.mubr.f32.gmra.mxu0 %v780
        %v1306 = vpop.f32.mrf.mxu0
        %v1307 = vadd.f32 0.0, %v1306
        %v1308 = vpop.f32.mrf.mxu0
        %1309 = vmatprep.mubr.f32.mxu0 %v869
        %1310 = vmatmul.mubr.f32.gmra.mxu0 %v837
        %v1311 = vpop.f32.mrf.mxu0
        %v1312 = vadd.f32 0.0, %v1311
        %v1313 = vpop.f32.mrf.mxu0
        %1314 = vmatprep.mubr.f32.mxu0 %v870
        %1315 = vmatmul.mubr.f32.gmra.mxu0 %v838
        %v1316 = vpop.f32.mrf.mxu0
        %v1317 = vadd.f32 0.0, %v1316
        %v1318 = vpop.f32.mrf.mxu0
        %1319 = vmatprep.mubr.f32.mxu0 %v871
        %1320 = vmatmul.mubr.f32.gmra.mxu0 %v839
        %v1321 = vpop.f32.mrf.mxu0
        %v1322 = vadd.f32 0.0, %v1321
        %v1323 = vpop.f32.mrf.mxu0
        %1324 = vmatprep.mubr.f32.mxu0 %v872
        %1325 = vmatmul.mubr.f32.gmra.mxu0 %v840
        %v1326 = vpop.f32.mrf.mxu0
        %v1327 = vadd.f32 0.0, %v1326
        %v1328 = vpop.f32.mrf.mxu0
        %1329 = vmatprep.mubr.f32.mxu0 %v873
        %1330 = vmatmul.mubr.f32.gmra.mxu0 %v841
        %v1331 = vpop.f32.mrf.mxu0
        %v1332 = vadd.f32 0.0, %v1331
        %v1333 = vpop.f32.mrf.mxu0
        %1334 = vmatprep.mubr.f32.mxu0 %v874
        %1335 = vmatmul.mubr.f32.gmra.mxu0 %v842
        %v1336 = vpop.f32.mrf.mxu0
        %v1337 = vadd.f32 0.0, %v1336
        %v1338 = vpop.f32.mrf.mxu0
        %1339 = vmatprep.mubr.f32.mxu0 %v875
        %1340 = vmatmul.mubr.f32.gmra.mxu0 %v843
        %v1341 = vpop.f32.mrf.mxu0
        %v1342 = vadd.f32 0.0, %v1341
        %v1343 = vpop.f32.mrf.mxu0
        %1344 = vmatprep.mubr.f32.mxu0 %v876
        %1345 = vmatmul.mubr.f32.gmra.mxu0 %v844
        %v1346 = vpop.f32.mrf.mxu0
        %v1347 = vadd.f32 0.0, %v1346
        %v1348 = vpop.f32.mrf.mxu0
        %1349 = vmatprep.mubr.f32.mxu0 %v933
        %1350 = vmatmul.mubr.f32.gmra.mxu0 %v901
        %v1351 = vpop.f32.mrf.mxu0
        %v1352 = vadd.f32 0.0, %v1351
        %v1353 = vpop.f32.mrf.mxu0
        %1354 = vmatprep.mubr.f32.mxu0 %v934
        %1355 = vmatmul.mubr.f32.gmra.mxu0 %v902
        %v1356 = vpop.f32.mrf.mxu0
        %v1357 = vadd.f32 0.0, %v1356
        %v1358 = vpop.f32.mrf.mxu0
        %1359 = vmatprep.mubr.f32.mxu0 %v935
        %1360 = vmatmul.mubr.f32.gmra.mxu0 %v903
        %v1361 = vpop.f32.mrf.mxu0
        %v1362 = vadd.f32 0.0, %v1361
        %v1363 = vpop.f32.mrf.mxu0
        %1364 = vmatprep.mubr.f32.mxu0 %v936
        %1365 = vmatmul.mubr.f32.gmra.mxu0 %v904
        %v1366 = vpop.f32.mrf.mxu0
        %v1367 = vadd.f32 0.0, %v1366
        %v1368 = vpop.f32.mrf.mxu0
        %1369 = vmatprep.mubr.f32.mxu0 %v937
        %1370 = vmatmul.mubr.f32.gmra.mxu0 %v905
        %v1371 = vpop.f32.mrf.mxu0
        %v1372 = vadd.f32 0.0, %v1371
        %v1373 = vpop.f32.mrf.mxu0
        %1374 = vmatprep.mubr.f32.mxu0 %v938
        %1375 = vmatmul.mubr.f32.gmra.mxu0 %v906
        %v1376 = vpop.f32.mrf.mxu0
        %v1377 = vadd.f32 0.0, %v1376
        %v1378 = vpop.f32.mrf.mxu0
        %1379 = vmatprep.mubr.f32.mxu0 %v939
        %1380 = vmatmul.mubr.f32.gmra.mxu0 %v907
        %v1381 = vpop.f32.mrf.mxu0
        %v1382 = vadd.f32 0.0, %v1381
        %v1383 = vpop.f32.mrf.mxu0
        %1384 = vmatprep.mubr.f32.mxu0 %v940
        %1385 = vmatmul.mubr.f32.gmra.mxu0 %v908
        %v1386 = vpop.f32.mrf.mxu0
        %v1387 = vadd.f32 0.0, %v1386
        %v1388 = vpop.f32.mrf.mxu0
        %1389 = vmatprep.mubr.f32.mxu0 %v997
        %1390 = vmatmul.mubr.f32.gmra.mxu0 %v965
        %v1391 = vpop.f32.mrf.mxu0
        %v1392 = vadd.f32 0.0, %v1391
        %v1393 = vpop.f32.mrf.mxu0
        %1394 = vmatprep.mubr.f32.mxu0 %v998
        %1395 = vmatmul.mubr.f32.gmra.mxu0 %v966
        %v1396 = vpop.f32.mrf.mxu0
        %v1397 = vadd.f32 0.0, %v1396
        %v1398 = vpop.f32.mrf.mxu0
        %1399 = vmatprep.mubr.f32.mxu0 %v999
        %1400 = vmatmul.mubr.f32.gmra.mxu0 %v967
        %v1401 = vpop.f32.mrf.mxu0
        %v1402 = vadd.f32 0.0, %v1401
        %v1403 = vpop.f32.mrf.mxu0
        %1404 = vmatprep.mubr.f32.mxu0 %v1000
        %1405 = vmatmul.mubr.f32.gmra.mxu0 %v968
        %v1406 = vpop.f32.mrf.mxu0
        %v1407 = vadd.f32 0.0, %v1406
        %v1408 = vpop.f32.mrf.mxu0
        %1409 = vmatprep.mubr.f32.mxu0 %v1001
        %1410 = vmatmul.mubr.f32.gmra.mxu0 %v969
        %v1411 = vpop.f32.mrf.mxu0
        %v1412 = vadd.f32 0.0, %v1411
        %v1413 = vpop.f32.mrf.mxu0
        %1414 = vmatprep.mubr.f32.mxu0 %v1002
        %1415 = vmatmul.mubr.f32.gmra.mxu0 %v970
        %v1416 = vpop.f32.mrf.mxu0
        %v1417 = vadd.f32 0.0, %v1416
        %v1418 = vpop.f32.mrf.mxu0
        %1419 = vmatprep.mubr.f32.mxu0 %v1003
        %1420 = vmatmul.mubr.f32.gmra.mxu0 %v971
        %v1421 = vpop.f32.mrf.mxu0
        %v1422 = vadd.f32 0.0, %v1421
        %v1423 = vpop.f32.mrf.mxu0
        %1424 = vmatprep.mubr.f32.mxu0 %v1004
        %1425 = vmatmul.mubr.f32.gmra.mxu0 %v972
        %v1426 = vpop.f32.mrf.mxu0
        %v1427 = vadd.f32 0.0, %v1426
        %v1428 = vpop.f32.mrf.mxu0
        %1429 = vdwg.mxu0
        %v1430 = vld [vmem:[%s244] sm:$0xff]
        %v1432 = vcombine.high %v1430, %v1430
        %v1434 = vunpack.c.l.s4 1966171168
        %v1435 = vunpack.c.0.s8 %v1434
        %v1436 = vlaneseq
        %v1437 = vshrl.u32 %v1436, 7
        %v1438 = vsub.s32 %v1435, %v1437
        %v1439 = vrot.slane %v1430, %v1438
        %v1441 = vunpack.c.l.s4 1966171168
        %v1442 = vunpack.c.0.s8 %v1441
        %v1443 = vlaneseq
        %v1444 = vshrl.u32 %v1443, 7
        %v1445 = vsub.s32 %v1442, %v1444
        %v1446 = vrot.slane %v1432, %v1445
        %v1447 = vcombine.high %v1439, %v1439
        %v1448 = vcombine.high %v1446, %v1446
        %v1450 = vunpack.c.l.s4 1966171168
        %v1451 = vunpack.c.0.s8 %v1450
        %v1452 = vlaneseq
        %v1453 = vshrl.u32 %v1452, 7
        %v1454 = vsub.s32 %v1451, %v1453
        %v1455 = vrot.slane %v1439, %v1454
        %v1457 = vunpack.c.l.s4 1966171168
        %v1458 = vunpack.c.0.s8 %v1457
        %v1459 = vlaneseq
        %v1460 = vshrl.u32 %v1459, 7
        %v1461 = vsub.s32 %v1458, %v1460
        %v1462 = vrot.slane %v1446, %v1461
        %v1464 = vunpack.c.l.s4 1966171168
        %v1465 = vunpack.c.0.s8 %v1464
        %v1466 = vlaneseq
        %v1467 = vshrl.u32 %v1466, 7
        %v1468 = vsub.s32 %v1465, %v1467
        %v1469 = vrot.slane %v1447, %v1468
        %v1471 = vunpack.c.l.s4 1966171168
        %v1472 = vunpack.c.0.s8 %v1471
        %v1473 = vlaneseq
        %v1474 = vshrl.u32 %v1473, 7
        %v1475 = vsub.s32 %v1472, %v1474
        %v1476 = vrot.slane %v1448, %v1475
        %v1477 = vcombine.high %v1455, %v1455
        %v1478 = vcombine.high %v1462, %v1462
        %v1479 = vcombine.high %v1469, %v1469
        %v1480 = vcombine.high %v1476, %v1476
        %v1481 = vlaneseq
        %v1482 = vshrl.u32 %v1481, 7
        %v1483 = vsub.s32 0, %v1482
        %v1484 = vrot.slane %v1455, %v1483
        %v1485 = vlaneseq
        %v1486 = vshrl.u32 %v1485, 7
        %v1487 = vsub.s32 0, %v1486
        %v1488 = vrot.slane %v1469, %v1487
        %v1489 = vlaneseq
        %v1490 = vshrl.u32 %v1489, 7
        %v1491 = vsub.s32 0, %v1490
        %v1492 = vrot.slane %v1477, %v1491
        %v1493 = vlaneseq
        %v1494 = vshrl.u32 %v1493, 7
        %v1495 = vsub.s32 0, %v1494
        %v1496 = vrot.slane %v1479, %v1495
        %v1497 = vlaneseq
        %v1498 = vshrl.u32 %v1497, 7
        %v1499 = vsub.s32 0, %v1498
        %v1500 = vrot.slane %v1462, %v1499
        %v1501 = vlaneseq
        %v1502 = vshrl.u32 %v1501, 7
        %v1503 = vsub.s32 0, %v1502
        %v1504 = vrot.slane %v1476, %v1503
        %v1505 = vlaneseq
        %v1506 = vshrl.u32 %v1505, 7
        %v1507 = vsub.s32 0, %v1506
        %v1508 = vrot.slane %v1478, %v1507
        %v1509 = vlaneseq
        %v1510 = vshrl.u32 %v1509, 7
        %v1511 = vsub.s32 0, %v1510
        %v1512 = vrot.slane %v1480, %v1511
        %v1521 = vadd.f32 %v1112, %v1484
        %v1522 = vadd.f32 %v1117, %v1484
        %v1523 = vadd.f32 %v1122, %v1484
        %v1524 = vadd.f32 %v1127, %v1484
        %v1525 = vadd.f32 %v1132, %v1484
        %v1526 = vadd.f32 %v1137, %v1484
        %v1527 = vadd.f32 %v1142, %v1484
        %v1528 = vadd.f32 %v1147, %v1484
        %v1529 = vadd.f32 %v1152, %v1488
        %v1530 = vadd.f32 %v1157, %v1488
        %v1531 = vadd.f32 %v1162, %v1488
        %v1532 = vadd.f32 %v1167, %v1488
        %v1533 = vadd.f32 %v1172, %v1488
        %v1534 = vadd.f32 %v1177, %v1488
        %v1535 = vadd.f32 %v1182, %v1488
        %v1536 = vadd.f32 %v1187, %v1488
        %v1537 = vadd.f32 %v1192, %v1492
        %v1538 = vadd.f32 %v1197, %v1492
        %v1539 = vadd.f32 %v1202, %v1492
        %v1540 = vadd.f32 %v1207, %v1492
        %v1541 = vadd.f32 %v1212, %v1492
        %v1542 = vadd.f32 %v1217, %v1492
        %v1543 = vadd.f32 %v1222, %v1492
        %v1544 = vadd.f32 %v1227, %v1492
        %v1545 = vadd.f32 %v1232, %v1496
        %v1546 = vadd.f32 %v1237, %v1496
        %v1547 = vadd.f32 %v1242, %v1496
        %v1548 = vadd.f32 %v1247, %v1496
        %v1549 = vadd.f32 %v1252, %v1496
        %v1550 = vadd.f32 %v1257, %v1496
        %v1551 = vadd.f32 %v1262, %v1496
        %v1552 = vadd.f32 %v1267, %v1496
        %v1553 = vadd.f32 %v1272, %v1500
        %v1554 = vadd.f32 %v1277, %v1500
        %v1555 = vadd.f32 %v1282, %v1500
        %v1556 = vadd.f32 %v1287, %v1500
        %v1557 = vadd.f32 %v1292, %v1500
        %v1558 = vadd.f32 %v1297, %v1500
        %v1559 = vadd.f32 %v1302, %v1500
        %v1560 = vadd.f32 %v1307, %v1500
        %v1561 = vadd.f32 %v1312, %v1504
        %v1562 = vadd.f32 %v1317, %v1504
        %v1563 = vadd.f32 %v1322, %v1504
        %v1564 = vadd.f32 %v1327, %v1504
        %v1565 = vadd.f32 %v1332, %v1504
        %v1566 = vadd.f32 %v1337, %v1504
        %v1567 = vadd.f32 %v1342, %v1504
        %v1568 = vadd.f32 %v1347, %v1504
        %v1569 = vadd.f32 %v1352, %v1508
        %v1570 = vadd.f32 %v1357, %v1508
        %v1571 = vadd.f32 %v1362, %v1508
        %v1572 = vadd.f32 %v1367, %v1508
        %v1573 = vadd.f32 %v1372, %v1508
        %v1574 = vadd.f32 %v1377, %v1508
        %v1575 = vadd.f32 %v1382, %v1508
        %v1576 = vadd.f32 %v1387, %v1508
        %v1577 = vadd.f32 %v1392, %v1512
        %v1578 = vadd.f32 %v1397, %v1512
        %v1579 = vadd.f32 %v1402, %v1512
        %v1580 = vadd.f32 %v1407, %v1512
        %v1581 = vadd.f32 %v1412, %v1512
        %v1582 = vadd.f32 %v1417, %v1512
        %v1583 = vadd.f32 %v1422, %v1512
        %v1584 = vadd.f32 %v1427, %v1512
        %v1585 = vmax.f32 %v1521, 0.0
        %v1586 = vmax.f32 %v1522, 0.0
        %v1587 = vmax.f32 %v1523, 0.0
        %v1588 = vmax.f32 %v1524, 0.0
        %v1589 = vmax.f32 %v1525, 0.0
        %v1590 = vmax.f32 %v1526, 0.0
        %v1591 = vmax.f32 %v1527, 0.0
        %v1592 = vmax.f32 %v1528, 0.0
        %v1593 = vmax.f32 %v1529, 0.0
        %v1594 = vmax.f32 %v1530, 0.0
        %v1595 = vmax.f32 %v1531, 0.0
        %v1596 = vmax.f32 %v1532, 0.0
        %v1597 = vmax.f32 %v1533, 0.0
        %v1598 = vmax.f32 %v1534, 0.0
        %v1599 = vmax.f32 %v1535, 0.0
        %v1600 = vmax.f32 %v1536, 0.0
        %v1601 = vmax.f32 %v1537, 0.0
        %v1602 = vmax.f32 %v1538, 0.0
        %v1603 = vmax.f32 %v1539, 0.0
        %v1604 = vmax.f32 %v1540, 0.0
        %v1605 = vmax.f32 %v1541, 0.0
        %v1606 = vmax.f32 %v1542, 0.0
        %v1607 = vmax.f32 %v1543, 0.0
        %v1608 = vmax.f32 %v1544, 0.0
        %v1609 = vmax.f32 %v1545, 0.0
        %v1610 = vmax.f32 %v1546, 0.0
        %v1611 = vmax.f32 %v1547, 0.0
        %v1612 = vmax.f32 %v1548, 0.0
        %v1613 = vmax.f32 %v1549, 0.0
        %v1614 = vmax.f32 %v1550, 0.0
        %v1615 = vmax.f32 %v1551, 0.0
        %v1616 = vmax.f32 %v1552, 0.0
        %v1617 = vmax.f32 %v1553, 0.0
        %v1618 = vmax.f32 %v1554, 0.0
        %v1619 = vmax.f32 %v1555, 0.0
        %v1620 = vmax.f32 %v1556, 0.0
        %v1621 = vmax.f32 %v1557, 0.0
        %v1622 = vmax.f32 %v1558, 0.0
        %v1623 = vmax.f32 %v1559, 0.0
        %v1624 = vmax.f32 %v1560, 0.0
        %v1625 = vmax.f32 %v1561, 0.0
        %v1626 = vmax.f32 %v1562, 0.0
        %v1627 = vmax.f32 %v1563, 0.0
        %v1628 = vmax.f32 %v1564, 0.0
        %v1629 = vmax.f32 %v1565, 0.0
        %v1630 = vmax.f32 %v1566, 0.0
        %v1631 = vmax.f32 %v1567, 0.0
        %v1632 = vmax.f32 %v1568, 0.0
        %v1633 = vmax.f32 %v1569, 0.0
        %v1634 = vmax.f32 %v1570, 0.0
        %v1635 = vmax.f32 %v1571, 0.0
        %v1636 = vmax.f32 %v1572, 0.0
        %v1637 = vmax.f32 %v1573, 0.0
        %v1638 = vmax.f32 %v1574, 0.0
        %v1639 = vmax.f32 %v1575, 0.0
        %v1640 = vmax.f32 %v1576, 0.0
        %v1641 = vmax.f32 %v1577, 0.0
        %v1642 = vmax.f32 %v1578, 0.0
        %v1643 = vmax.f32 %v1579, 0.0
        %v1644 = vmax.f32 %v1580, 0.0
        %v1645 = vmax.f32 %v1581, 0.0
        %v1646 = vmax.f32 %v1582, 0.0
        %v1647 = vmax.f32 %v1583, 0.0
        %v1648 = vmax.f32 %v1584, 0.0
        %v1649 = vld [vmem:[%s3] sm:$0xff]
        %v1650 = vld [vmem:[%s3 + $0x8] sm:$0xff]
        %v1651 = vld [vmem:[%s3 + $0x10] sm:$0xff]
        %v1652 = vld [vmem:[%s3 + $0x18] sm:$0xff]
        %v1653 = vld [vmem:[%s3 + $0x20] sm:$0xff]
        %v1654 = vld [vmem:[%s3 + $0x28] sm:$0xff]
        %v1655 = vld [vmem:[%s3 + $0x30] sm:$0xff]
        %v1656 = vld [vmem:[%s3 + $0x38] sm:$0xff]
        %v1657 = vld [vmem:[%s3 + $0x40] sm:$0xff]
        %v1658 = vld [vmem:[%s3 + $0x48] sm:$0xff]
        %v1659 = vld [vmem:[%s3 + $0x50] sm:$0xff]
        %v1660 = vld [vmem:[%s3 + $0x58] sm:$0xff]
        %v1661 = vld [vmem:[%s3 + $0x60] sm:$0xff]
        %v1662 = vld [vmem:[%s3 + $0x68] sm:$0xff]
        %v1663 = vld [vmem:[%s3 + $0x70] sm:$0xff]
        %v1664 = vld [vmem:[%s3 + $0x78] sm:$0xff]
        %v1665 = vld [vmem:[%s4] sm:$0x1]
        %v1667 = vlaneseq
        %v1668 = vshrl.u32 %v1667, 7
        %v1669 = vsub.s32 0, %v1668
        %v1670 = vrot.slane %v1665, %v1669
        %1672 = vmatprep.subr.mxu0 0.0
        %1673 = vmatpush1.msra.mxu0 %v1664
        %1674 = vmatprep.subr.mxu0 0.0
        %1675 = vmatpush1.msra.mxu0 %v1663
        %1676 = vmatprep.subr.mxu0 0.0
        %1677 = vmatpush1.msra.mxu0 %v1662
        %1678 = vmatprep.subr.mxu0 0.0
        %1679 = vmatpush1.msra.mxu0 %v1661
        %1680 = vmatprep.subr.mxu0 0.0
        %1681 = vmatpush1.msra.mxu0 %v1660
        %1682 = vmatprep.subr.mxu0 0.0
        %1683 = vmatpush1.msra.mxu0 %v1659
        %1684 = vmatprep.subr.mxu0 0.0
        %1685 = vmatpush1.msra.mxu0 %v1658
        %1686 = vmatprep.subr.mxu0 0.0
        %1687 = vmatpush1.msra.mxu0 %v1657
        %1688 = vmatprep.subr.mxu0 0.0
        %1689 = vmatpush1.msra.mxu0 %v1656
        %1690 = vmatprep.subr.mxu0 0.0
        %1691 = vmatpush1.msra.mxu0 %v1655
        %1692 = vmatprep.subr.mxu0 0.0
        %1693 = vmatpush1.msra.mxu0 %v1654
        %1694 = vmatprep.subr.mxu0 0.0
        %1695 = vmatpush1.msra.mxu0 %v1653
        %1696 = vmatprep.subr.mxu0 0.0
        %1697 = vmatpush1.msra.mxu0 %v1652
        %1698 = vmatprep.subr.mxu0 0.0
        %1699 = vmatpush1.msra.mxu0 %v1651
        %1700 = vmatprep.subr.mxu0 0.0
        %1701 = vmatpush1.msra.mxu0 %v1650
        %1702 = vmatprep.subr.mxu0 0.0
        %1703 = vmatpush1.msra.mxu0 %v1649
        %1704 = vmatprep.subr.mxu0 0.0
        %1705 = vmatpush2.msra.mxu0 0.0
        %1706 = vmatprep.subr.mxu0 0.0
        %1707 = vmatpush2.msra.mxu0 0.0
        %1708 = vmatprep.subr.mxu0 0.0
        %1709 = vmatpush2.msra.mxu0 0.0
        %1710 = vmatprep.subr.mxu0 0.0
        %1711 = vmatpush2.msra.mxu0 0.0
        %1712 = vmatprep.subr.mxu0 0.0
        %1713 = vmatpush2.msra.mxu0 0.0
        %1714 = vmatprep.subr.mxu0 0.0
        %1715 = vmatpush2.msra.mxu0 0.0
        %1716 = vmatprep.subr.mxu0 0.0
        %1717 = vmatpush2.msra.mxu0 0.0
        %1718 = vmatprep.subr.mxu0 0.0
        %1719 = vmatpush2.msra.mxu0 0.0
        %1720 = vmatprep.subr.mxu0 0.0
        %1721 = vmatpush2.msra.mxu0 0.0
        %1722 = vmatprep.subr.mxu0 0.0
        %1723 = vmatpush2.msra.mxu0 0.0
        %1724 = vmatprep.subr.mxu0 0.0
        %1725 = vmatpush2.msra.mxu0 0.0
        %1726 = vmatprep.subr.mxu0 0.0
        %1727 = vmatpush2.msra.mxu0 0.0
        %1728 = vmatprep.subr.mxu0 0.0
        %1729 = vmatpush2.msra.mxu0 0.0
        %1730 = vmatprep.subr.mxu0 0.0
        %1731 = vmatpush2.msra.mxu0 0.0
        %1732 = vmatprep.subr.mxu0 0.0
        %1733 = vmatpush2.msra.mxu0 0.0
        %1734 = vmatprep.subr.mxu0 0.0
        %1735 = vmatpush2.msra.mxu0 0.0
        %1736 = vmatprep.mubr.f32.mxu0 0.0
        %1737 = vmatmul.mubr.f32.gmra.mxu0 %v1585
        %v1738 = vpop.f32.mrf.mxu0
        %v1739 = vadd.f32 %v1670, %v1738
        %v1740 = vpop.f32.mrf.mxu0
        %1741 = vmatprep.mubr.f32.mxu0 0.0
        %1742 = vmatmul.mubr.f32.gmra.mxu0 %v1586
        %v1743 = vpop.f32.mrf.mxu0
        %v1744 = vadd.f32 %v1670, %v1743
        %v1745 = vpop.f32.mrf.mxu0
        %1746 = vmatprep.mubr.f32.mxu0 0.0
        %1747 = vmatmul.mubr.f32.gmra.mxu0 %v1587
        %v1748 = vpop.f32.mrf.mxu0
        %v1749 = vadd.f32 %v1670, %v1748
        %v1750 = vpop.f32.mrf.mxu0
        %1751 = vmatprep.mubr.f32.mxu0 0.0
        %1752 = vmatmul.mubr.f32.gmra.mxu0 %v1588
        %v1753 = vpop.f32.mrf.mxu0
        %v1754 = vadd.f32 %v1670, %v1753
        %v1755 = vpop.f32.mrf.mxu0
        %1756 = vmatprep.mubr.f32.mxu0 0.0
        %1757 = vmatmul.mubr.f32.gmra.mxu0 %v1589
        %v1758 = vpop.f32.mrf.mxu0
        %v1759 = vadd.f32 %v1670, %v1758
        %v1760 = vpop.f32.mrf.mxu0
        %1761 = vmatprep.mubr.f32.mxu0 0.0
        %1762 = vmatmul.mubr.f32.gmra.mxu0 %v1590
        %v1763 = vpop.f32.mrf.mxu0
        %v1764 = vadd.f32 %v1670, %v1763
        %v1765 = vpop.f32.mrf.mxu0
        %1766 = vmatprep.mubr.f32.mxu0 0.0
        %1767 = vmatmul.mubr.f32.gmra.mxu0 %v1591
        %v1768 = vpop.f32.mrf.mxu0
        %v1769 = vadd.f32 %v1670, %v1768
        %v1770 = vpop.f32.mrf.mxu0
        %1771 = vmatprep.mubr.f32.mxu0 0.0
        %1772 = vmatmul.mubr.f32.gmra.mxu0 %v1592
        %v1773 = vpop.f32.mrf.mxu0
        %v1774 = vadd.f32 %v1670, %v1773
        %v1775 = vpop.f32.mrf.mxu0
        %1776 = vmatprep.mubr.f32.mxu0 0.0
        %1777 = vmatmul.mubr.f32.gmra.mxu0 %v1593
        %v1778 = vpop.f32.mrf.mxu0
        %v1779 = vadd.f32 %v1670, %v1778
        %v1780 = vpop.f32.mrf.mxu0
        %1781 = vmatprep.mubr.f32.mxu0 0.0
        %1782 = vmatmul.mubr.f32.gmra.mxu0 %v1594
        %v1783 = vpop.f32.mrf.mxu0
        %v1784 = vadd.f32 %v1670, %v1783
        %v1785 = vpop.f32.mrf.mxu0
        %1786 = vmatprep.mubr.f32.mxu0 0.0
        %1787 = vmatmul.mubr.f32.gmra.mxu0 %v1595
        %v1788 = vpop.f32.mrf.mxu0
        %v1789 = vadd.f32 %v1670, %v1788
        %v1790 = vpop.f32.mrf.mxu0
        %1791 = vmatprep.mubr.f32.mxu0 0.0
        %1792 = vmatmul.mubr.f32.gmra.mxu0 %v1596
        %v1793 = vpop.f32.mrf.mxu0
        %v1794 = vadd.f32 %v1670, %v1793
        %v1795 = vpop.f32.mrf.mxu0
        %1796 = vmatprep.mubr.f32.mxu0 0.0
        %1797 = vmatmul.mubr.f32.gmra.mxu0 %v1597
        %v1798 = vpop.f32.mrf.mxu0
        %v1799 = vadd.f32 %v1670, %v1798
        %v1800 = vpop.f32.mrf.mxu0
        %1801 = vmatprep.mubr.f32.mxu0 0.0
        %1802 = vmatmul.mubr.f32.gmra.mxu0 %v1598
        %v1803 = vpop.f32.mrf.mxu0
        %v1804 = vadd.f32 %v1670, %v1803
        %v1805 = vpop.f32.mrf.mxu0
        %1806 = vmatprep.mubr.f32.mxu0 0.0
        %1807 = vmatmul.mubr.f32.gmra.mxu0 %v1599
        %v1808 = vpop.f32.mrf.mxu0
        %v1809 = vadd.f32 %v1670, %v1808
        %v1810 = vpop.f32.mrf.mxu0
        %1811 = vmatprep.mubr.f32.mxu0 0.0
        %1812 = vmatmul.mubr.f32.gmra.mxu0 %v1600
        %v1813 = vpop.f32.mrf.mxu0
        %v1814 = vadd.f32 %v1670, %v1813
        %v1815 = vpop.f32.mrf.mxu0
        %1816 = vmatprep.mubr.f32.mxu0 0.0
        %1817 = vmatmul.mubr.f32.gmra.mxu0 %v1601
        %v1818 = vpop.f32.mrf.mxu0
        %v1819 = vadd.f32 %v1670, %v1818
        %v1820 = vpop.f32.mrf.mxu0
        %1821 = vmatprep.mubr.f32.mxu0 0.0
        %1822 = vmatmul.mubr.f32.gmra.mxu0 %v1602
        %v1823 = vpop.f32.mrf.mxu0
        %v1824 = vadd.f32 %v1670, %v1823
        %v1825 = vpop.f32.mrf.mxu0
        %1826 = vmatprep.mubr.f32.mxu0 0.0
        %1827 = vmatmul.mubr.f32.gmra.mxu0 %v1603
        %v1828 = vpop.f32.mrf.mxu0
        %v1829 = vadd.f32 %v1670, %v1828
        %v1830 = vpop.f32.mrf.mxu0
        %1831 = vmatprep.mubr.f32.mxu0 0.0
        %1832 = vmatmul.mubr.f32.gmra.mxu0 %v1604
        %v1833 = vpop.f32.mrf.mxu0
        %v1834 = vadd.f32 %v1670, %v1833
        %v1835 = vpop.f32.mrf.mxu0
        %1836 = vmatprep.mubr.f32.mxu0 0.0
        %1837 = vmatmul.mubr.f32.gmra.mxu0 %v1605
        %v1838 = vpop.f32.mrf.mxu0
        %v1839 = vadd.f32 %v1670, %v1838
        %v1840 = vpop.f32.mrf.mxu0
        %1841 = vmatprep.mubr.f32.mxu0 0.0
        %1842 = vmatmul.mubr.f32.gmra.mxu0 %v1606
        %v1843 = vpop.f32.mrf.mxu0
        %v1844 = vadd.f32 %v1670, %v1843
        %v1845 = vpop.f32.mrf.mxu0
        %1846 = vmatprep.mubr.f32.mxu0 0.0
        %1847 = vmatmul.mubr.f32.gmra.mxu0 %v1607
        %v1848 = vpop.f32.mrf.mxu0
        %v1849 = vadd.f32 %v1670, %v1848
        %v1850 = vpop.f32.mrf.mxu0
        %1851 = vmatprep.mubr.f32.mxu0 0.0
        %1852 = vmatmul.mubr.f32.gmra.mxu0 %v1608
        %v1853 = vpop.f32.mrf.mxu0
        %v1854 = vadd.f32 %v1670, %v1853
        %v1855 = vpop.f32.mrf.mxu0
        %1856 = vmatprep.mubr.f32.mxu0 0.0
        %1857 = vmatmul.mubr.f32.gmra.mxu0 %v1609
        %v1858 = vpop.f32.mrf.mxu0
        %v1859 = vadd.f32 %v1670, %v1858
        %v1860 = vpop.f32.mrf.mxu0
        %1861 = vmatprep.mubr.f32.mxu0 0.0
        %1862 = vmatmul.mubr.f32.gmra.mxu0 %v1610
        %v1863 = vpop.f32.mrf.mxu0
        %v1864 = vadd.f32 %v1670, %v1863
        %v1865 = vpop.f32.mrf.mxu0
        %1866 = vmatprep.mubr.f32.mxu0 0.0
        %1867 = vmatmul.mubr.f32.gmra.mxu0 %v1611
        %v1868 = vpop.f32.mrf.mxu0
        %v1869 = vadd.f32 %v1670, %v1868
        %v1870 = vpop.f32.mrf.mxu0
        %1871 = vmatprep.mubr.f32.mxu0 0.0
        %1872 = vmatmul.mubr.f32.gmra.mxu0 %v1612
        %v1873 = vpop.f32.mrf.mxu0
        %v1874 = vadd.f32 %v1670, %v1873
        %v1875 = vpop.f32.mrf.mxu0
        %1876 = vmatprep.mubr.f32.mxu0 0.0
        %1877 = vmatmul.mubr.f32.gmra.mxu0 %v1613
        %v1878 = vpop.f32.mrf.mxu0
        %v1879 = vadd.f32 %v1670, %v1878
        %v1880 = vpop.f32.mrf.mxu0
        %1881 = vmatprep.mubr.f32.mxu0 0.0
        %1882 = vmatmul.mubr.f32.gmra.mxu0 %v1614
        %v1883 = vpop.f32.mrf.mxu0
        %v1884 = vadd.f32 %v1670, %v1883
        %v1885 = vpop.f32.mrf.mxu0
        %1886 = vmatprep.mubr.f32.mxu0 0.0
        %1887 = vmatmul.mubr.f32.gmra.mxu0 %v1615
        %v1888 = vpop.f32.mrf.mxu0
        %v1889 = vadd.f32 %v1670, %v1888
        %v1890 = vpop.f32.mrf.mxu0
        %1891 = vmatprep.mubr.f32.mxu0 0.0
        %1892 = vmatmul.mubr.f32.gmra.mxu0 %v1616
        %v1893 = vpop.f32.mrf.mxu0
        %v1894 = vadd.f32 %v1670, %v1893
        %v1895 = vpop.f32.mrf.mxu0
        %1896 = vmatprep.mubr.f32.mxu0 0.0
        %1897 = vmatmul.mubr.f32.gmra.mxu0 %v1617
        %v1898 = vpop.f32.mrf.mxu0
        %v1899 = vadd.f32 %v1670, %v1898
        %v1900 = vpop.f32.mrf.mxu0
        %1901 = vmatprep.mubr.f32.mxu0 0.0
        %1902 = vmatmul.mubr.f32.gmra.mxu0 %v1618
        %v1903 = vpop.f32.mrf.mxu0
        %v1904 = vadd.f32 %v1670, %v1903
        %v1905 = vpop.f32.mrf.mxu0
        %1906 = vmatprep.mubr.f32.mxu0 0.0
        %1907 = vmatmul.mubr.f32.gmra.mxu0 %v1619
        %v1908 = vpop.f32.mrf.mxu0
        %v1909 = vadd.f32 %v1670, %v1908
        %v1910 = vpop.f32.mrf.mxu0
        %1911 = vmatprep.mubr.f32.mxu0 0.0
        %1912 = vmatmul.mubr.f32.gmra.mxu0 %v1620
        %v1913 = vpop.f32.mrf.mxu0
        %v1914 = vadd.f32 %v1670, %v1913
        %v1915 = vpop.f32.mrf.mxu0
        %1916 = vmatprep.mubr.f32.mxu0 0.0
        %1917 = vmatmul.mubr.f32.gmra.mxu0 %v1621
        %v1918 = vpop.f32.mrf.mxu0
        %v1919 = vadd.f32 %v1670, %v1918
        %v1920 = vpop.f32.mrf.mxu0
        %1921 = vmatprep.mubr.f32.mxu0 0.0
        %1922 = vmatmul.mubr.f32.gmra.mxu0 %v1622
        %v1923 = vpop.f32.mrf.mxu0
        %v1924 = vadd.f32 %v1670, %v1923
        %v1925 = vpop.f32.mrf.mxu0
        %1926 = vmatprep.mubr.f32.mxu0 0.0
        %1927 = vmatmul.mubr.f32.gmra.mxu0 %v1623
        %v1928 = vpop.f32.mrf.mxu0
        %v1929 = vadd.f32 %v1670, %v1928
        %v1930 = vpop.f32.mrf.mxu0
        %1931 = vmatprep.mubr.f32.mxu0 0.0
        %1932 = vmatmul.mubr.f32.gmra.mxu0 %v1624
        %v1933 = vpop.f32.mrf.mxu0
        %v1934 = vadd.f32 %v1670, %v1933
        %v1935 = vpop.f32.mrf.mxu0
        %1936 = vmatprep.mubr.f32.mxu0 0.0
        %1937 = vmatmul.mubr.f32.gmra.mxu0 %v1625
        %v1938 = vpop.f32.mrf.mxu0
        %v1939 = vadd.f32 %v1670, %v1938
        %v1940 = vpop.f32.mrf.mxu0
        %1941 = vmatprep.mubr.f32.mxu0 0.0
        %1942 = vmatmul.mubr.f32.gmra.mxu0 %v1626
        %v1943 = vpop.f32.mrf.mxu0
        %v1944 = vadd.f32 %v1670, %v1943
        %v1945 = vpop.f32.mrf.mxu0
        %1946 = vmatprep.mubr.f32.mxu0 0.0
        %1947 = vmatmul.mubr.f32.gmra.mxu0 %v1627
        %v1948 = vpop.f32.mrf.mxu0
        %v1949 = vadd.f32 %v1670, %v1948
        %v1950 = vpop.f32.mrf.mxu0
        %1951 = vmatprep.mubr.f32.mxu0 0.0
        %1952 = vmatmul.mubr.f32.gmra.mxu0 %v1628
        %v1953 = vpop.f32.mrf.mxu0
        %v1954 = vadd.f32 %v1670, %v1953
        %v1955 = vpop.f32.mrf.mxu0
        %1956 = vmatprep.mubr.f32.mxu0 0.0
        %1957 = vmatmul.mubr.f32.gmra.mxu0 %v1629
        %v1958 = vpop.f32.mrf.mxu0
        %v1959 = vadd.f32 %v1670, %v1958
        %v1960 = vpop.f32.mrf.mxu0
        %1961 = vmatprep.mubr.f32.mxu0 0.0
        %1962 = vmatmul.mubr.f32.gmra.mxu0 %v1630
        %v1963 = vpop.f32.mrf.mxu0
        %v1964 = vadd.f32 %v1670, %v1963
        %v1965 = vpop.f32.mrf.mxu0
        %1966 = vmatprep.mubr.f32.mxu0 0.0
        %1967 = vmatmul.mubr.f32.gmra.mxu0 %v1631
        %v1968 = vpop.f32.mrf.mxu0
        %v1969 = vadd.f32 %v1670, %v1968
        %v1970 = vpop.f32.mrf.mxu0
        %1971 = vmatprep.mubr.f32.mxu0 0.0
        %1972 = vmatmul.mubr.f32.gmra.mxu0 %v1632
        %v1973 = vpop.f32.mrf.mxu0
        %v1974 = vadd.f32 %v1670, %v1973
        %v1975 = vpop.f32.mrf.mxu0
        %1976 = vmatprep.mubr.f32.mxu0 0.0
        %1977 = vmatmul.mubr.f32.gmra.mxu0 %v1633
        %v1978 = vpop.f32.mrf.mxu0
        %v1979 = vadd.f32 %v1670, %v1978
        %v1980 = vpop.f32.mrf.mxu0
        %1981 = vmatprep.mubr.f32.mxu0 0.0
        %1982 = vmatmul.mubr.f32.gmra.mxu0 %v1634
        %v1983 = vpop.f32.mrf.mxu0
        %v1984 = vadd.f32 %v1670, %v1983
        %v1985 = vpop.f32.mrf.mxu0
        %1986 = vmatprep.mubr.f32.mxu0 0.0
        %1987 = vmatmul.mubr.f32.gmra.mxu0 %v1635
        %v1988 = vpop.f32.mrf.mxu0
        %v1989 = vadd.f32 %v1670, %v1988
        %v1990 = vpop.f32.mrf.mxu0
        %1991 = vmatprep.mubr.f32.mxu0 0.0
        %1992 = vmatmul.mubr.f32.gmra.mxu0 %v1636
        %v1993 = vpop.f32.mrf.mxu0
        %v1994 = vadd.f32 %v1670, %v1993
        %v1995 = vpop.f32.mrf.mxu0
        %1996 = vmatprep.mubr.f32.mxu0 0.0
        %1997 = vmatmul.mubr.f32.gmra.mxu0 %v1637
        %v1998 = vpop.f32.mrf.mxu0
        %v1999 = vadd.f32 %v1670, %v1998
        %v2000 = vpop.f32.mrf.mxu0
        %2001 = vmatprep.mubr.f32.mxu0 0.0
        %2002 = vmatmul.mubr.f32.gmra.mxu0 %v1638
        %v2003 = vpop.f32.mrf.mxu0
        %v2004 = vadd.f32 %v1670, %v2003
        %v2005 = vpop.f32.mrf.mxu0
        %2006 = vmatprep.mubr.f32.mxu0 0.0
        %2007 = vmatmul.mubr.f32.gmra.mxu0 %v1639
        %v2008 = vpop.f32.mrf.mxu0
        %v2009 = vadd.f32 %v1670, %v2008
        %v2010 = vpop.f32.mrf.mxu0
        %2011 = vmatprep.mubr.f32.mxu0 0.0
        %2012 = vmatmul.mubr.f32.gmra.mxu0 %v1640
        %v2013 = vpop.f32.mrf.mxu0
        %v2014 = vadd.f32 %v1670, %v2013
        %v2015 = vpop.f32.mrf.mxu0
        %2016 = vmatprep.mubr.f32.mxu0 0.0
        %2017 = vmatmul.mubr.f32.gmra.mxu0 %v1641
        %v2018 = vpop.f32.mrf.mxu0
        %v2019 = vadd.f32 %v1670, %v2018
        %v2020 = vpop.f32.mrf.mxu0
        %2021 = vmatprep.mubr.f32.mxu0 0.0
        %2022 = vmatmul.mubr.f32.gmra.mxu0 %v1642
        %v2023 = vpop.f32.mrf.mxu0
        %v2024 = vadd.f32 %v1670, %v2023
        %v2025 = vpop.f32.mrf.mxu0
        %2026 = vmatprep.mubr.f32.mxu0 0.0
        %2027 = vmatmul.mubr.f32.gmra.mxu0 %v1643
        %v2028 = vpop.f32.mrf.mxu0
        %v2029 = vadd.f32 %v1670, %v2028
        %v2030 = vpop.f32.mrf.mxu0
        %2031 = vmatprep.mubr.f32.mxu0 0.0
        %2032 = vmatmul.mubr.f32.gmra.mxu0 %v1644
        %v2033 = vpop.f32.mrf.mxu0
        %v2034 = vadd.f32 %v1670, %v2033
        %v2035 = vpop.f32.mrf.mxu0
        %2036 = vmatprep.mubr.f32.mxu0 0.0
        %2037 = vmatmul.mubr.f32.gmra.mxu0 %v1645
        %v2038 = vpop.f32.mrf.mxu0
        %v2039 = vadd.f32 %v1670, %v2038
        %v2040 = vpop.f32.mrf.mxu0
        %2041 = vmatprep.mubr.f32.mxu0 0.0
        %2042 = vmatmul.mubr.f32.gmra.mxu0 %v1646
        %v2043 = vpop.f32.mrf.mxu0
        %v2044 = vadd.f32 %v1670, %v2043
        %v2045 = vpop.f32.mrf.mxu0
        %2046 = vmatprep.mubr.f32.mxu0 0.0
        %2047 = vmatmul.mubr.f32.gmra.mxu0 %v1647
        %v2048 = vpop.f32.mrf.mxu0
        %v2049 = vadd.f32 %v1670, %v2048
        %v2050 = vpop.f32.mrf.mxu0
        %2051 = vmatprep.mubr.f32.mxu0 0.0
        %2052 = vmatmul.mubr.f32.gmra.mxu0 %v1648
        %v2053 = vpop.f32.mrf.mxu0
        %v2054 = vadd.f32 %v1670, %v2053
        %v2055 = vpop.f32.mrf.mxu0
        %2056 = vdwg.mxu0
        %2057 = vxpose.xlu0.b32.start [1/16] %v1739, 128
        %2058 = vxpose.xlu0.b32.cont [2/16] %v1744, 128
        %2059 = vxpose.xlu0.b32.cont [3/16] %v1749, 128
        %2060 = vxpose.xlu0.b32.cont [4/16] %v1754, 128
        %2061 = vxpose.xlu0.b32.cont [5/16] %v1759, 128
        %2062 = vxpose.xlu0.b32.cont [6/16] %v1764, 128
        %2063 = vxpose.xlu0.b32.cont [7/16] %v1769, 128
        %2064 = vxpose.xlu0.b32.cont [8/16] %v1774, 128
        %2065 = vxpose.xlu0.b32.cont [9/16] 0.0, 128
        %2066 = vxpose.xlu0.b32.cont [10/16] 0.0, 128
        %2067 = vxpose.xlu0.b32.cont [11/16] 0.0, 128
        %2068 = vxpose.xlu0.b32.cont [12/16] 0.0, 128
        %2069 = vxpose.xlu0.b32.cont [13/16] 0.0, 128
        %2070 = vxpose.xlu0.b32.cont [14/16] 0.0, 128
        %2071 = vxpose.xlu0.b32.cont [15/16] 0.0, 128
        %2072 = vxpose.xlu0.b32.end [16/16] 0.0, 128
        %v2073 = vpop.trf.xlu0
        %v2074 = vpop.trf.xlu0
        %v2075 = vpop.trf.xlu0
        %v2076 = vpop.trf.xlu0
        %v2077 = vpop.trf.xlu0
        %v2078 = vpop.trf.xlu0
        %v2079 = vpop.trf.xlu0
        %v2080 = vpop.trf.xlu0
        %v2081 = vpop.trf.xlu0
        %v2082 = vpop.trf.xlu0
        %v2083 = vpop.trf.xlu0
        %v2084 = vpop.trf.xlu0
        %v2085 = vpop.trf.xlu0
        %v2086 = vpop.trf.xlu0
        %v2087 = vpop.trf.xlu0
        %v2088 = vpop.trf.xlu0
        %2089 = vxpose.xlu0.b32.start [1/16] %v1779, 128
        %2090 = vxpose.xlu0.b32.cont [2/16] %v1784, 128
        %2091 = vxpose.xlu0.b32.cont [3/16] %v1789, 128
        %2092 = vxpose.xlu0.b32.cont [4/16] %v1794, 128
        %2093 = vxpose.xlu0.b32.cont [5/16] %v1799, 128
        %2094 = vxpose.xlu0.b32.cont [6/16] %v1804, 128
        %2095 = vxpose.xlu0.b32.cont [7/16] %v1809, 128
        %2096 = vxpose.xlu0.b32.cont [8/16] %v1814, 128
        %2097 = vxpose.xlu0.b32.cont [9/16] 0.0, 128
        %2098 = vxpose.xlu0.b32.cont [10/16] 0.0, 128
        %2099 = vxpose.xlu0.b32.cont [11/16] 0.0, 128
        %2100 = vxpose.xlu0.b32.cont [12/16] 0.0, 128
        %2101 = vxpose.xlu0.b32.cont [13/16] 0.0, 128
        %2102 = vxpose.xlu0.b32.cont [14/16] 0.0, 128
        %2103 = vxpose.xlu0.b32.cont [15/16] 0.0, 128
        %2104 = vxpose.xlu0.b32.end [16/16] 0.0, 128
        %v2105 = vpop.trf.xlu0
        %v2106 = vpop.trf.xlu0
        %v2107 = vpop.trf.xlu0
        %v2108 = vpop.trf.xlu0
        %v2109 = vpop.trf.xlu0
        %v2110 = vpop.trf.xlu0
        %v2111 = vpop.trf.xlu0
        %v2112 = vpop.trf.xlu0
        %v2113 = vpop.trf.xlu0
        %v2114 = vpop.trf.xlu0
        %v2115 = vpop.trf.xlu0
        %v2116 = vpop.trf.xlu0
        %v2117 = vpop.trf.xlu0
        %v2118 = vpop.trf.xlu0
        %v2119 = vpop.trf.xlu0
        %v2120 = vpop.trf.xlu0
        %2121 = vxpose.xlu0.b32.start [1/16] %v1819, 128
        %2122 = vxpose.xlu0.b32.cont [2/16] %v1824, 128
        %2123 = vxpose.xlu0.b32.cont [3/16] %v1829, 128
        %2124 = vxpose.xlu0.b32.cont [4/16] %v1834, 128
        %2125 = vxpose.xlu0.b32.cont [5/16] %v1839, 128
        %2126 = vxpose.xlu0.b32.cont [6/16] %v1844, 128
        %2127 = vxpose.xlu0.b32.cont [7/16] %v1849, 128
        %2128 = vxpose.xlu0.b32.cont [8/16] %v1854, 128
        %2129 = vxpose.xlu0.b32.cont [9/16] 0.0, 128
        %2130 = vxpose.xlu0.b32.cont [10/16] 0.0, 128
        %2131 = vxpose.xlu0.b32.cont [11/16] 0.0, 128
        %2132 = vxpose.xlu0.b32.cont [12/16] 0.0, 128
        %2133 = vxpose.xlu0.b32.cont [13/16] 0.0, 128
        %2134 = vxpose.xlu0.b32.cont [14/16] 0.0, 128
        %2135 = vxpose.xlu0.b32.cont [15/16] 0.0, 128
        %2136 = vxpose.xlu0.b32.end [16/16] 0.0, 128
        %v2137 = vpop.trf.xlu0
        %v2138 = vpop.trf.xlu0
        %v2139 = vpop.trf.xlu0
        %v2140 = vpop.trf.xlu0
        %v2141 = vpop.trf.xlu0
        %v2142 = vpop.trf.xlu0
        %v2143 = vpop.trf.xlu0
        %v2144 = vpop.trf.xlu0
        %v2145 = vpop.trf.xlu0
        %v2146 = vpop.trf.xlu0
        %v2147 = vpop.trf.xlu0
        %v2148 = vpop.trf.xlu0
        %v2149 = vpop.trf.xlu0
        %v2150 = vpop.trf.xlu0
        %v2151 = vpop.trf.xlu0
        %v2152 = vpop.trf.xlu0
        %2153 = vxpose.xlu0.b32.start [1/16] %v1859, 128
        %2154 = vxpose.xlu0.b32.cont [2/16] %v1864, 128
        %2155 = vxpose.xlu0.b32.cont [3/16] %v1869, 128
        %2156 = vxpose.xlu0.b32.cont [4/16] %v1874, 128
        %2157 = vxpose.xlu0.b32.cont [5/16] %v1879, 128
        %2158 = vxpose.xlu0.b32.cont [6/16] %v1884, 128
        %2159 = vxpose.xlu0.b32.cont [7/16] %v1889, 128
        %2160 = vxpose.xlu0.b32.cont [8/16] %v1894, 128
        %2161 = vxpose.xlu0.b32.cont [9/16] 0.0, 128
        %2162 = vxpose.xlu0.b32.cont [10/16] 0.0, 128
        %2163 = vxpose.xlu0.b32.cont [11/16] 0.0, 128
        %2164 = vxpose.xlu0.b32.cont [12/16] 0.0, 128
        %2165 = vxpose.xlu0.b32.cont [13/16] 0.0, 128
        %2166 = vxpose.xlu0.b32.cont [14/16] 0.0, 128
        %2167 = vxpose.xlu0.b32.cont [15/16] 0.0, 128
        %2168 = vxpose.xlu0.b32.end [16/16] 0.0, 128
        %v2169 = vpop.trf.xlu0
        %v2170 = vpop.trf.xlu0
        %v2171 = vpop.trf.xlu0
        %v2172 = vpop.trf.xlu0
        %v2173 = vpop.trf.xlu0
        %v2174 = vpop.trf.xlu0
        %v2175 = vpop.trf.xlu0
        %v2176 = vpop.trf.xlu0
        %v2177 = vpop.trf.xlu0
        %v2178 = vpop.trf.xlu0
        %v2179 = vpop.trf.xlu0
        %v2180 = vpop.trf.xlu0
        %v2181 = vpop.trf.xlu0
        %v2182 = vpop.trf.xlu0
        %v2183 = vpop.trf.xlu0
        %v2184 = vpop.trf.xlu0
        %2185 = vxpose.xlu0.b32.start [1/16] %v1899, 128
        %2186 = vxpose.xlu0.b32.cont [2/16] %v1904, 128
        %2187 = vxpose.xlu0.b32.cont [3/16] %v1909, 128
        %2188 = vxpose.xlu0.b32.cont [4/16] %v1914, 128
        %2189 = vxpose.xlu0.b32.cont [5/16] %v1919, 128
        %2190 = vxpose.xlu0.b32.cont [6/16] %v1924, 128
        %2191 = vxpose.xlu0.b32.cont [7/16] %v1929, 128
        %2192 = vxpose.xlu0.b32.cont [8/16] %v1934, 128
        %2193 = vxpose.xlu0.b32.cont [9/16] 0.0, 128
        %2194 = vxpose.xlu0.b32.cont [10/16] 0.0, 128
        %2195 = vxpose.xlu0.b32.cont [11/16] 0.0, 128
        %2196 = vxpose.xlu0.b32.cont [12/16] 0.0, 128
        %2197 = vxpose.xlu0.b32.cont [13/16] 0.0, 128
        %2198 = vxpose.xlu0.b32.cont [14/16] 0.0, 128
        %2199 = vxpose.xlu0.b32.cont [15/16] 0.0, 128
        %2200 = vxpose.xlu0.b32.end [16/16] 0.0, 128
        %v2201 = vpop.trf.xlu0
        %v2202 = vpop.trf.xlu0
        %v2203 = vpop.trf.xlu0
        %v2204 = vpop.trf.xlu0
        %v2205 = vpop.trf.xlu0
        %v2206 = vpop.trf.xlu0
        %v2207 = vpop.trf.xlu0
        %v2208 = vpop.trf.xlu0
        %v2209 = vpop.trf.xlu0
        %v2210 = vpop.trf.xlu0
        %v2211 = vpop.trf.xlu0
        %v2212 = vpop.trf.xlu0
        %v2213 = vpop.trf.xlu0
        %v2214 = vpop.trf.xlu0
        %v2215 = vpop.trf.xlu0
        %v2216 = vpop.trf.xlu0
        %2217 = vxpose.xlu0.b32.start [1/16] %v1939, 128
        %2218 = vxpose.xlu0.b32.cont [2/16] %v1944, 128
        %2219 = vxpose.xlu0.b32.cont [3/16] %v1949, 128
        %2220 = vxpose.xlu0.b32.cont [4/16] %v1954, 128
        %2221 = vxpose.xlu0.b32.cont [5/16] %v1959, 128
        %2222 = vxpose.xlu0.b32.cont [6/16] %v1964, 128
        %2223 = vxpose.xlu0.b32.cont [7/16] %v1969, 128
        %2224 = vxpose.xlu0.b32.cont [8/16] %v1974, 128
        %2225 = vxpose.xlu0.b32.cont [9/16] 0.0, 128
        %2226 = vxpose.xlu0.b32.cont [10/16] 0.0, 128
        %2227 = vxpose.xlu0.b32.cont [11/16] 0.0, 128
        %2228 = vxpose.xlu0.b32.cont [12/16] 0.0, 128
        %2229 = vxpose.xlu0.b32.cont [13/16] 0.0, 128
        %2230 = vxpose.xlu0.b32.cont [14/16] 0.0, 128
        %2231 = vxpose.xlu0.b32.cont [15/16] 0.0, 128
        %2232 = vxpose.xlu0.b32.end [16/16] 0.0, 128
        %v2233 = vpop.trf.xlu0
        %v2234 = vpop.trf.xlu0
        %v2235 = vpop.trf.xlu0
        %v2236 = vpop.trf.xlu0
        %v2237 = vpop.trf.xlu0
        %v2238 = vpop.trf.xlu0
        %v2239 = vpop.trf.xlu0
        %v2240 = vpop.trf.xlu0
        %v2241 = vpop.trf.xlu0
        %v2242 = vpop.trf.xlu0
        %v2243 = vpop.trf.xlu0
        %v2244 = vpop.trf.xlu0
        %v2245 = vpop.trf.xlu0
        %v2246 = vpop.trf.xlu0
        %v2247 = vpop.trf.xlu0
        %v2248 = vpop.trf.xlu0
        %2249 = vxpose.xlu0.b32.start [1/16] %v1979, 128
        %2250 = vxpose.xlu0.b32.cont [2/16] %v1984, 128
        %2251 = vxpose.xlu0.b32.cont [3/16] %v1989, 128
        %2252 = vxpose.xlu0.b32.cont [4/16] %v1994, 128
        %2253 = vxpose.xlu0.b32.cont [5/16] %v1999, 128
        %2254 = vxpose.xlu0.b32.cont [6/16] %v2004, 128
        %2255 = vxpose.xlu0.b32.cont [7/16] %v2009, 128
        %2256 = vxpose.xlu0.b32.cont [8/16] %v2014, 128
        %2257 = vxpose.xlu0.b32.cont [9/16] 0.0, 128
        %2258 = vxpose.xlu0.b32.cont [10/16] 0.0, 128
        %2259 = vxpose.xlu0.b32.cont [11/16] 0.0, 128
        %2260 = vxpose.xlu0.b32.cont [12/16] 0.0, 128
        %2261 = vxpose.xlu0.b32.cont [13/16] 0.0, 128
        %2262 = vxpose.xlu0.b32.cont [14/16] 0.0, 128
        %2263 = vxpose.xlu0.b32.cont [15/16] 0.0, 128
        %2264 = vxpose.xlu0.b32.end [16/16] 0.0, 128
        %v2265 = vpop.trf.xlu0
        %v2266 = vpop.trf.xlu0
        %v2267 = vpop.trf.xlu0
        %v2268 = vpop.trf.xlu0
        %v2269 = vpop.trf.xlu0
        %v2270 = vpop.trf.xlu0
        %v2271 = vpop.trf.xlu0
        %v2272 = vpop.trf.xlu0
        %v2273 = vpop.trf.xlu0
        %v2274 = vpop.trf.xlu0
        %v2275 = vpop.trf.xlu0
        %v2276 = vpop.trf.xlu0
        %v2277 = vpop.trf.xlu0
        %v2278 = vpop.trf.xlu0
        %v2279 = vpop.trf.xlu0
        %v2280 = vpop.trf.xlu0
        %2281 = vxpose.xlu0.b32.start [1/16] %v2019, 128
        %2282 = vxpose.xlu0.b32.cont [2/16] %v2024, 128
        %2283 = vxpose.xlu0.b32.cont [3/16] %v2029, 128
        %2284 = vxpose.xlu0.b32.cont [4/16] %v2034, 128
        %2285 = vxpose.xlu0.b32.cont [5/16] %v2039, 128
        %2286 = vxpose.xlu0.b32.cont [6/16] %v2044, 128
        %2287 = vxpose.xlu0.b32.cont [7/16] %v2049, 128
        %2288 = vxpose.xlu0.b32.cont [8/16] %v2054, 128
        %2289 = vxpose.xlu0.b32.cont [9/16] 0.0, 128
        %2290 = vxpose.xlu0.b32.cont [10/16] 0.0, 128
        %2291 = vxpose.xlu0.b32.cont [11/16] 0.0, 128
        %2292 = vxpose.xlu0.b32.cont [12/16] 0.0, 128
        %2293 = vxpose.xlu0.b32.cont [13/16] 0.0, 128
        %2294 = vxpose.xlu0.b32.cont [14/16] 0.0, 128
        %2295 = vxpose.xlu0.b32.cont [15/16] 0.0, 128
        %2296 = vxpose.xlu0.b32.end [16/16] 0.0, 128
        %v2297 = vpop.trf.xlu0
        %v2298 = vpop.trf.xlu0
        %v2299 = vpop.trf.xlu0
        %v2300 = vpop.trf.xlu0
        %v2301 = vpop.trf.xlu0
        %v2302 = vpop.trf.xlu0
        %v2303 = vpop.trf.xlu0
        %v2304 = vpop.trf.xlu0
        %v2305 = vpop.trf.xlu0
        %v2306 = vpop.trf.xlu0
        %v2307 = vpop.trf.xlu0
        %v2308 = vpop.trf.xlu0
        %v2309 = vpop.trf.xlu0
        %v2310 = vpop.trf.xlu0
        %v2311 = vpop.trf.xlu0
        %v2312 = vpop.trf.xlu0
        %v2313 = vcombine.low %v2073, %v2137
        %v2315 = vunpack.c.l.s4 1983009808
        %v2316 = vunpack.c.0.s8 %v2315
        %v2317 = vlaneseq
        %v2318 = vshrl.u32 %v2317, 7
        %v2319 = vsub.s32 %v2316, %v2318
        %v2320 = vrot.slane %v2313, %v2319
        %v2321 = vcombine.low %v2105, %v2169
        %v2323 = vunpack.c.l.s4 1983009808
        %v2324 = vunpack.c.0.s8 %v2323
        %v2325 = vlaneseq
        %v2326 = vshrl.u32 %v2325, 7
        %v2327 = vsub.s32 %v2324, %v2326
        %v2328 = vrot.slane %v2321, %v2327
        %v2329 = vcombine.low %v2201, %v2265
        %v2331 = vunpack.c.l.s4 1983009808
        %v2332 = vunpack.c.0.s8 %v2331
        %v2333 = vlaneseq
        %v2334 = vshrl.u32 %v2333, 7
        %v2335 = vsub.s32 %v2332, %v2334
        %v2336 = vrot.slane %v2329, %v2335
        %v2337 = vcombine.low %v2233, %v2297
        %v2339 = vunpack.c.l.s4 1983009808
        %v2340 = vunpack.c.0.s8 %v2339
        %v2341 = vlaneseq
        %v2342 = vshrl.u32 %v2341, 7
        %v2343 = vsub.s32 %v2340, %v2342
        %v2344 = vrot.slane %v2337, %v2343
        %v2345 = vcombine.low %v2320, %v2328
        %v2347 = vunpack.c.l.s4 1934713408
        %v2348 = vunpack.c.0.s8 %v2347
        %v2349 = vlaneseq
        %v2350 = vshrl.u32 %v2349, 7
        %v2351 = vsub.s32 %v2348, %v2350
        %v2352 = vrot.slane %v2345, %v2351
        %v2353 = vcombine.low %v2336, %v2344
        %v2355 = vunpack.c.l.s4 1934713408
        %v2356 = vunpack.c.0.s8 %v2355
        %v2357 = vlaneseq
        %v2358 = vshrl.u32 %v2357, 7
        %v2359 = vsub.s32 %v2356, %v2358
        %v2360 = vrot.slane %v2353, %v2359
        %v2361 = vcombine.low %v2352, %v2360
        %v2362 = vcombine.high %v2352, %v2360
        %2364 = vrot.lane.b32.xlu0 %v2362, 64
        %v2365 = vpop.permute.xlu0 %2364
        %vm2367 = vcmask 523264
        %v2368 = vsel %vm2367, %v2361, %v2365
        %2369 = vmax.xlane.f32.xlu0 %v2368
        %v2370 = vpop.xlane.xlu0 %2369
        %v2371 = vsub.f32 %v2368, %v2370
        %v2372 = vmul.f32 %v2371, 1.442695
        %v2373 = vpow.pop %v2372
        %2374 = vadd.xlane.f32.xlu0 %v2373
        %v2375 = vpop.xlane.xlu0 %2374
        %v2376 = vrcp.pop %v2375
        %v2377 = vmul.f32 %v2373, %v2376
        %2378 = vst [vmem:[%s233] sm:$0xff] %v2377
        %s2379 = sand.u32 %s142, 1
        %s2380 = scalar_lea.sflag [#allocation3], %s2379
        %s2381 = sand.u32 %s142, 1
        %s2382 = smul.addr %s2381, 8
        %s2383 = scalar_lea.vmem [#allocation2], %s2382
        // Predicated region
        $region41: #{tpu_custom_call.1} parent=39 // pred_check
          %p2384 = pneg %p152
        $region42: #{tpu_custom_call.1} parent=39 // pred_check_branch
          %2386 = sbr.rel (%p2384) target = $region44
        $region43: #{tpu_custom_call.1} parent=39 // pred_region
          %s2388 = ssub.s32 128, 128
          %2389 = vsyncadd %s2380, %s2388
          %s2390 = smul.addr %s19, 128
          %s2391 = scalar_lea.hbm %s5, %s2390
          %s2393 = sshll.u32 %s2383, 4
          %s2394 = int_to_ptr.vmem [resolvable:$true] %s2393
          %2396 = dma.vmem_to_hbm [thread:$0]  %s2394, 128, %s2391, %s2380
        $region44: #{tpu_custom_call.1} parent=39 // pred_fallthru
          _
      $region40: #{tpu_custom_call.1} parent=5 // pred_fallthru
        _
      %p2397 = scmp.le.s32.totalorder 2, %s14
      // Predicated region
      $region45: #{tpu_custom_call.1} parent=5 // pred_check
        %p2398 = pneg %p2397
      $region46: #{tpu_custom_call.1} parent=5 // pred_check_branch
        %2400 = sbr.rel (%p2398) target = $region48
      $region47: #{tpu_custom_call.1} parent=5 // pred_region
        %s2401 = ssub.s32 %s14, 2
        // Predicated region
        $region49: #{tpu_custom_call.1} parent=47 // pred_check
          %p2402 = pneg %p158
        $region50: #{tpu_custom_call.1} parent=47 // pred_check_branch
          %2404 = sbr.rel (%p2402) target = $region52
        $region51: #{tpu_custom_call.1} parent=47 // pred_region
          %s2405 = sand.u32 %s143, 1
          %s2406 = scalar_lea.sflag [#allocation3], %s2405
          %s2407 = sand.u32 %s143, 1
          %s2408 = smul.addr %s2407, 8
          %s2409 = scalar_lea.vmem [#allocation2], %s2408
          %2410 = dma.done %s2406, 128
        $region52: #{tpu_custom_call.1} parent=47 // pred_fallthru
          _
      $region48: #{tpu_custom_call.1} parent=5 // pred_fallthru
        _
    $region6: #{tpu_custom_call.1} parent=1 // loop_footer
      %s18 = sadd.s32 1, %s14
    $region7: #{tpu_custom_call.1} parent=1 // loop_footer_branch
      %13 = sbr.rel target = $region3
    $region8: #{tpu_custom_call.1} parent=1 // loop_exit
      _
    %2411 = vsyncpa [#allocation3], 1
    %s2412 = scalar_lea.sflag [#allocation3], 1
    %2413 = vsyncpa %s2412, 1

</llo_original>
